<compile_context>
chip_gen: v7x
topology: tpu7x:2x2x1
jax: 0.10.0
libtpu: 0.0.40
codegen_flags: <defaults>
</compile_context>

<pallas_src>
import functools

import jax
import jax.numpy as jnp
from jax.experimental import pallas as pl
from jax.experimental.pallas import tpu as pltpu

BPAD = 8  # full sublane tile for the batch dimension


def _rnn_kernel(num_layers, seq_len, bpad, *refs):
    """refs = (x_ref,                              # (T*BPAD, input_dim)
               [w_ih_t, w_hh_t, bias] * L,         # (Din,H) (H,H) (1,H)
               fc_w_t, fc_b,                       # (H, O_pad), (1, O_pad)
               out_ref)                            # (BPAD, O_pad)
    """
    x_ref = refs[0]
    layer_refs = []
    idx = 1
    for _ in range(num_layers):
        layer_refs.append(refs[idx:idx + 3])
        idx += 3
    fc_w_ref = refs[idx]
    fc_b_ref = refs[idx + 1]
    out_ref = refs[idx + 2]

    hidden = layer_refs[0][1].shape[0]

    # ---- Layer-0 input projection hoisted out of the recurrence -------------
    # One (T*BPAD, D) @ (D, H) matmul; bias (b_ih + b_hh, folded at prepare
    # time) broadcast once.  Rows t*BPAD .. t*BPAD+B-1 are the real batch.
    w_ih0_ref, _, bias0_ref = layer_refs[0]
    proj0 = (
        jnp.dot(x_ref[...], w_ih0_ref[...], preferred_element_type=jnp.float32)
        + bias0_ref[...]
    )                                                    # (T*BPAD, H)

    # Small weights loaded once as values (live across the unrolled loop is
    # fine at H=32; for H >= ~256 read the refs inside the step instead).
    w_hh = [layer_refs[l][1][...] for l in range(num_layers)]
    w_ih = [None] + [layer_refs[l][0][...] for l in range(1, num_layers)]
    bias = [None] + [layer_refs[l][2][...] for l in range(1, num_layers)]

    zeros = jnp.zeros((bpad, hidden), jnp.float32)       # matches torch.zeros h0
    h = [zeros for _ in range(num_layers)]               # current hidden per layer
    below = [None] * num_layers                          # latest output of layer l

    # ---- Wavefront over (layer, time): step s runs layer l at t = s - l -----
    # Layers are visited high->low inside a step so below[l-1] still holds the
    # value layer l needs (produced at wavefront step s-1).  Everything is a
    # fully unrolled single basic block, so the LLO scheduler sees the whole
    # ~T+L dependency chain and keeps independent matmuls in flight.
    for s in range(seq_len + num_layers - 1):
        for l in reversed(range(num_layers)):
            t = s - l
            if t < 0 or t >= seq_len:
                continue
            rec = jnp.dot(h[l], w_hh[l], preferred_element_type=jnp.float32)
            if l == 0:
                r0 = t * bpad                            # sublane-aligned slice
                pre = proj0[r0:r0 + bpad, :] + rec
            else:
                # Input projection of upper layers: off the critical path,
                # overlaps with the recurrence dot above.
                pre = (
                    jnp.dot(below[l - 1], w_ih[l],
                            preferred_element_type=jnp.float32)
                    + bias[l]
                    + rec
                )
            h[l] = jnp.maximum(pre, 0.0)
            below[l] = h[l]

    # ---- fc(out[:, -1, :]) straight from the loop carry ---------------------
    # fc weight/bias are lane-padded to O_pad=128 -> single unmasked full-tile
    # store of the output block.
    out_ref[...] = (
        jnp.dot(h[num_layers - 1], fc_w_ref[...],
                preferred_element_type=jnp.float32)
        + fc_b_ref[...]
    )


def prepare_params(params):
    """One-time weight preparation (hoisted out of the per-call forward):
    transpose to (Din,H)/(H,H)/(H,O_pad), fold b_ih+b_hh, lane-pad the fc."""
    hidden = params["rnn"][0][0].shape[0]
    out_dim = params["fc_w"].shape[0]
    o_pad = ((out_dim + 127) // 128) * 128

    rnn = []
    for (w_ih, w_hh, b_ih, b_hh) in params["rnn"]:
        rnn.append((
            jnp.transpose(w_ih).astype(jnp.float32),                 # (Din, H)
            jnp.transpose(w_hh).astype(jnp.float32),                 # (H, H)
            (b_ih + b_hh).reshape(1, hidden).astype(jnp.float32),    # (1, H)
        ))
    fc_w_t = (
        jnp.zeros((hidden, o_pad), jnp.float32)
        .at[:, :out_dim].set(jnp.transpose(params["fc_w"]).astype(jnp.float32))
    )
    fc_b = (
        jnp.zeros((1, o_pad), jnp.float32)
        .at[:, :out_dim].set(params["fc_b"].reshape(1, out_dim).astype(jnp.float32))
    )
    return {"rnn": rnn, "fc_w_t": fc_w_t, "fc_b": fc_b, "output_dim": out_dim}


def rnn_model_forward(x, prepped):
    """x: (B, T, input_dim) float32 (batch_first, like the PyTorch module).
    prepped: output of prepare_params (weights already transposed/padded)."""
    B, T, D = x.shape
    rnn = prepped["rnn"]
    L = len(rnn)
    H = rnn[0][1].shape[0]
    O = prepped["output_dim"]
    O_pad = prepped["fc_w_t"].shape[1]

    # TODO(synk): for B > 8, tile the batch over a "parallel" grid axis instead
    # of padding a single sublane tile.
    assert B <= BPAD, "this kernel assumes batch fits one sublane tile"

    # Time-major, batch padded to a full sublane tile: row t*BPAD + b is
    # (timestep t, batch b); rows b >= B are zero (harmless, sliced away).
    xt = jnp.transpose(x, (1, 0, 2)).astype(jnp.float32)             # (T, B, D)
    x_pad = (
        jnp.zeros((T, BPAD, D), jnp.float32).at[:, :B, :].set(xt)
        .reshape(T * BPAD, D)
    )

    inputs = [x_pad]
    for (w_ih_t, w_hh_t, bias) in rnn:
        inputs += [w_ih_t, w_hh_t, bias]
    inputs += [prepped["fc_w_t"], prepped["fc_b"]]

    def full_spec(a):
        nd = a.ndim
        return pl.BlockSpec(a.shape, lambda i, _nd=nd: (0,) * _nd)

    # Single grid step on one TensorCore: at B=2/T=8 the kernel is
    # latency-bound; extra grid steps / core-splitting only add overhead.
    grid_spec = pltpu.PrefetchScalarGridSpec(
        num_scalar_prefetch=0,
        grid=(1,),
        in_specs=[full_spec(a) for a in inputs],
        out_specs=pl.BlockSpec((BPAD, O_pad), lambda i: (0, 0)),
        scratch_shapes=[],                      # inter-layer sequence lives in vregs
    )

    # Advisory cost for XLA's scheduler (tiny, latency-bound kernel).
    flops = 2 * T * BPAD * D * H                              # layer-0 hoisted proj
    flops += T * 2 * BPAD * H * H                             # layer-0 recurrence
    flops += (L - 1) * T * 2 * (2 * BPAD * H * H)             # upper layers (ih + hh)
    flops += 2 * BPAD * H * O_pad                             # fc
    bytes_accessed = 4 * (
        int(x_pad.size)
        + sum(int(a.size) for layer in rnn for a in layer)
        + int(prepped["fc_w_t"].size) + int(prepped["fc_b"].size)
        + BPAD * O_pad
    )

    kernel = functools.partial(_rnn_kernel, L, T, BPAD)
    out_full = pl.pallas_call(
        kernel,
        out_shape=jax.ShapeDtypeStruct((BPAD, O_pad), jnp.float32),
        grid_spec=grid_spec,
        compiler_params=pltpu.CompilerParams(dimension_semantics=("arbitrary",)),
        cost_estimate=pl.CostEstimate(
            flops=flops, transcendentals=0, bytes_accessed=bytes_accessed
        ),
    )(*inputs)

    return out_full[:B, :O]


def rnn_model_reference(x, params):
    """Pure-JAX reference matching torch.nn.RNN(relu) + Linear semantics."""
    seq = x.astype(jnp.float32)
    B = x.shape[0]
    H = params["rnn"][0][0].shape[0]
    for (w_ih, w_hh, b_ih, b_hh) in params["rnn"]:
        h = jnp.zeros((B, H), jnp.float32)
        outs = []
        for t in range(x.shape[1]):
            h = jax.nn.relu(seq[:, t, :] @ w_ih.T + b_ih + h @ w_hh.T + b_hh)
            outs.append(h)
        seq = jnp.stack(outs, axis=1)
    return seq[:, -1, :] @ params["fc_w"].T + params["fc_b"]


def init_params(key, input_dim, hidden_dim, layer_dim, output_dim):
    """Deterministic init mimicking PyTorch's U(-1/sqrt(H), 1/sqrt(H))."""
    bound = 1.0 / jnp.sqrt(jnp.float32(hidden_dim))
    rnn = []
    for layer in range(layer_dim):
        d_in = input_dim if layer == 0 else hidden_dim
        key, k1, k2, k3, k4 = jax.random.split(key, 5)
        rnn.append((
            jax.random.uniform(k1, (hidden_dim, d_in), jnp.float32, -bound, bound),
            jax.random.uniform(k2, (hidden_dim, hidden_dim), jnp.float32, -bound, bound),
            jax.random.uniform(k3, (hidden_dim,), jnp.float32, -bound, bound),
            jax.random.uniform(k4, (hidden_dim,), jnp.float32, -bound, bound),
        ))
    key, k5, k6 = jax.random.split(key, 3)
    fc_bound = 1.0 / jnp.sqrt(jnp.float32(hidden_dim))
    fc_w = jax.random.uniform(k5, (output_dim, hidden_dim), jnp.float32, -fc_bound, fc_bound)
    fc_b = jax.random.uniform(k6, (output_dim,), jnp.float32, -fc_bound, fc_bound)
    return {"rnn": rnn, "fc_w": fc_w, "fc_b": fc_b}


if __name__ == "__main__":
    # Small shapes consistent with the module's forward:
    # batch=2, seq=8, input_dim=16, hidden=32, layers=2, output=4.
    B, T, INPUT_DIM, HIDDEN_DIM, LAYER_DIM, OUTPUT_DIM = 2, 8, 16, 32, 2, 4

    key = jax.random.PRNGKey(0)
    key, xk = jax.random.split(key)
    x = jax.random.normal(xk, (B, T, INPUT_DIM), jnp.float32)
    params = init_params(key, INPUT_DIM, HIDDEN_DIM, LAYER_DIM, OUTPUT_DIM)

    # One-time weight preparation (transposes/padding hoisted out of forward).
    prepped = jax.tree_util.tree_map(jax.block_until_ready, prepare_params(params))

    out = rnn_model_forward(x, prepped)
    out = jax.block_until_ready(out)

    ref = rnn_model_reference(x, params)
    assert out.shape == (B, OUTPUT_DIM)
    assert jnp.allclose(out, ref, atol=1e-4, rtol=1e-4), (out, ref)

    print("KERNEL_OK")
</pallas_src>

<mosaic_0001>
module attributes {stable_mosaic.version = 11 : i64} {
  func.func @_rnn_kernel(%arg0: i32, %arg1: memref<64x16xf32, #tpu.memory_space<vmem>>, %arg2: memref<16x32xf32, #tpu.memory_space<vmem>>, %arg3: memref<32x32xf32, #tpu.memory_space<vmem>>, %arg4: memref<1x32xf32, #tpu.memory_space<vmem>>, %arg5: memref<32x32xf32, #tpu.memory_space<vmem>>, %arg6: memref<32x32xf32, #tpu.memory_space<vmem>>, %arg7: memref<1x32xf32, #tpu.memory_space<vmem>>, %arg8: memref<32x128xf32, #tpu.memory_space<vmem>>, %arg9: memref<1x128xf32, #tpu.memory_space<vmem>>, %arg10: memref<8x128xf32, #tpu.memory_space<vmem>>) attributes {dimension_semantics = [#tpu.dimension_semantics<arbitrary>], iteration_bounds = array<i64: 1>, scalar_prefetch = 0 : i64, scratch_operands = 0 : i64, tpu.core_type = #tpu.core_type<tc>, window_params = [{pipeline_mode = #tpu.pipeline_mode<synchronous>, transform_indices = @transform_0, window_bounds = array<i64: 64, 16>}, {pipeline_mode = #tpu.pipeline_mode<synchronous>, transform_indices = @transform_1, window_bounds = array<i64: 16, 32>}, {pipeline_mode = #tpu.pipeline_mode<synchronous>, transform_indices = @transform_2, window_bounds = array<i64: 32, 32>}, {pipeline_mode = #tpu.pipeline_mode<synchronous>, transform_indices = @transform_3, window_bounds = array<i64: 1, 32>}, {pipeline_mode = #tpu.pipeline_mode<synchronous>, transform_indices = @transform_4, window_bounds = array<i64: 32, 32>}, {pipeline_mode = #tpu.pipeline_mode<synchronous>, transform_indices = @transform_5, window_bounds = array<i64: 32, 32>}, {pipeline_mode = #tpu.pipeline_mode<synchronous>, transform_indices = @transform_6, window_bounds = array<i64: 1, 32>}, {pipeline_mode = #tpu.pipeline_mode<synchronous>, transform_indices = @transform_7, window_bounds = array<i64: 32, 128>}, {pipeline_mode = #tpu.pipeline_mode<synchronous>, transform_indices = @transform_8, window_bounds = array<i64: 1, 128>}, {pipeline_mode = #tpu.pipeline_mode<synchronous>, transform_indices = @transform_9, window_bounds = array<i64: 8, 128>}]} {
    %c0 = arith.constant 0 : index
    %c0_0 = arith.constant 0 : index
    %0 = vector.load %arg1[%c0, %c0_0] : memref<64x16xf32, #tpu.memory_space<vmem>>, vector<64x16xf32>
    %c0_1 = arith.constant 0 : index
    %c0_2 = arith.constant 0 : index
    %1 = vector.load %arg2[%c0_1, %c0_2] : memref<16x32xf32, #tpu.memory_space<vmem>>, vector<16x32xf32>
    %cst = arith.constant dense<0.000000e+00> : vector<64x32xf32>
    %2 = tpu.matmul %0, %1, %cst {dimension_numbers = #tpu.dot_dimension_numbers<[1], [0], [0], [1], [0, 0, 1, 1], [], []>} : vector<64x16xf32>, vector<16x32xf32>, vector<64x32xf32> -> vector<64x32xf32>
    %c0_3 = arith.constant 0 : index
    %c0_4 = arith.constant 0 : index
    %3 = vector.load %arg4[%c0_3, %c0_4] : memref<1x32xf32, #tpu.memory_space<vmem>>, vector<1x32xf32>
    %4 = vector.broadcast %3 : vector<1x32xf32> to vector<64x32xf32>
    %5 = arith.addf %2, %4 : vector<64x32xf32>
    %c0_5 = arith.constant 0 : index
    %c0_6 = arith.constant 0 : index
    %6 = vector.load %arg3[%c0_5, %c0_6] : memref<32x32xf32, #tpu.memory_space<vmem>>, vector<32x32xf32>
    %c0_7 = arith.constant 0 : index
    %c0_8 = arith.constant 0 : index
    %7 = vector.load %arg6[%c0_7, %c0_8] : memref<32x32xf32, #tpu.memory_space<vmem>>, vector<32x32xf32>
    %c0_9 = arith.constant 0 : index
    %c0_10 = arith.constant 0 : index
    %8 = vector.load %arg5[%c0_9, %c0_10] : memref<32x32xf32, #tpu.memory_space<vmem>>, vector<32x32xf32>
    %c0_11 = arith.constant 0 : index
    %c0_12 = arith.constant 0 : index
    %9 = vector.load %arg7[%c0_11, %c0_12] : memref<1x32xf32, #tpu.memory_space<vmem>>, vector<1x32xf32>
    %cst_13 = arith.constant 0.000000e+00 : f32
    %10 = vector.broadcast %cst_13 : f32 to vector<8x32xf32>
    %cst_14 = arith.constant dense<0.000000e+00> : vector<8x32xf32>
    %11 = tpu.matmul %10, %6, %cst_14 {dimension_numbers = #tpu.dot_dimension_numbers<[1], [0], [0], [1], [0, 0, 1, 1], [], []>} : vector<8x32xf32>, vector<32x32xf32>, vector<8x32xf32> -> vector<8x32xf32>
    %12 = vector.extract_strided_slice %5 {offsets = [0, 0], sizes = [8, 32], strides = [1, 1]} : vector<64x32xf32> to vector<8x32xf32>
    %13 = arith.addf %12, %11 : vector<8x32xf32>
    %cst_15 = arith.constant 0.000000e+00 : f32
    %14 = vector.broadcast %cst_15 : f32 to vector<8x32xf32>
    %15 = arith.maximumf %13, %14 : vector<8x32xf32>
    %cst_16 = arith.constant dense<0.000000e+00> : vector<8x32xf32>
    %16 = tpu.matmul %10, %7, %cst_16 {dimension_numbers = #tpu.dot_dimension_numbers<[1], [0], [0], [1], [0, 0, 1, 1], [], []>} : vector<8x32xf32>, vector<32x32xf32>, vector<8x32xf32> -> vector<8x32xf32>
    %cst_17 = arith.constant dense<0.000000e+00> : vector<8x32xf32>
    %17 = tpu.matmul %15, %8, %cst_17 {dimension_numbers = #tpu.dot_dimension_numbers<[1], [0], [0], [1], [0, 0, 1, 1], [], []>} : vector<8x32xf32>, vector<32x32xf32>, vector<8x32xf32> -> vector<8x32xf32>
    %18 = vector.broadcast %9 : vector<1x32xf32> to vector<8x32xf32>
    %19 = arith.addf %17, %18 : vector<8x32xf32>
    %20 = arith.addf %19, %16 : vector<8x32xf32>
    %cst_18 = arith.constant 0.000000e+00 : f32
    %21 = vector.broadcast %cst_18 : f32 to vector<8x32xf32>
    %22 = arith.maximumf %20, %21 : vector<8x32xf32>
    %cst_19 = arith.constant dense<0.000000e+00> : vector<8x32xf32>
    %23 = tpu.matmul %15, %6, %cst_19 {dimension_numbers = #tpu.dot_dimension_numbers<[1], [0], [0], [1], [0, 0, 1, 1], [], []>} : vector<8x32xf32>, vector<32x32xf32>, vector<8x32xf32> -> vector<8x32xf32>
    %24 = vector.extract_strided_slice %5 {offsets = [8, 0], sizes = [8, 32], strides = [1, 1]} : vector<64x32xf32> to vector<8x32xf32>
    %25 = arith.addf %24, %23 : vector<8x32xf32>
    %cst_20 = arith.constant 0.000000e+00 : f32
    %26 = vector.broadcast %cst_20 : f32 to vector<8x32xf32>
    %27 = arith.maximumf %25, %26 : vector<8x32xf32>
    %cst_21 = arith.constant dense<0.000000e+00> : vector<8x32xf32>
    %28 = tpu.matmul %22, %7, %cst_21 {dimension_numbers = #tpu.dot_dimension_numbers<[1], [0], [0], [1], [0, 0, 1, 1], [], []>} : vector<8x32xf32>, vector<32x32xf32>, vector<8x32xf32> -> vector<8x32xf32>
    %cst_22 = arith.constant dense<0.000000e+00> : vector<8x32xf32>
    %29 = tpu.matmul %27, %8, %cst_22 {dimension_numbers = #tpu.dot_dimension_numbers<[1], [0], [0], [1], [0, 0, 1, 1], [], []>} : vector<8x32xf32>, vector<32x32xf32>, vector<8x32xf32> -> vector<8x32xf32>
    %30 = vector.broadcast %9 : vector<1x32xf32> to vector<8x32xf32>
    %31 = arith.addf %29, %30 : vector<8x32xf32>
    %32 = arith.addf %31, %28 : vector<8x32xf32>
    %cst_23 = arith.constant 0.000000e+00 : f32
    %33 = vector.broadcast %cst_23 : f32 to vector<8x32xf32>
    %34 = arith.maximumf %32, %33 : vector<8x32xf32>
    %cst_24 = arith.constant dense<0.000000e+00> : vector<8x32xf32>
    %35 = tpu.matmul %27, %6, %cst_24 {dimension_numbers = #tpu.dot_dimension_numbers<[1], [0], [0], [1], [0, 0, 1, 1], [], []>} : vector<8x32xf32>, vector<32x32xf32>, vector<8x32xf32> -> vector<8x32xf32>
    %36 = vector.extract_strided_slice %5 {offsets = [16, 0], sizes = [8, 32], strides = [1, 1]} : vector<64x32xf32> to vector<8x32xf32>
    %37 = arith.addf %36, %35 : vector<8x32xf32>
    %cst_25 = arith.constant 0.000000e+00 : f32
    %38 = vector.broadcast %cst_25 : f32 to vector<8x32xf32>
    %39 = arith.maximumf %37, %38 : vector<8x32xf32>
    %cst_26 = arith.constant dense<0.000000e+00> : vector<8x32xf32>
    %40 = tpu.matmul %34, %7, %cst_26 {dimension_numbers = #tpu.dot_dimension_numbers<[1], [0], [0], [1], [0, 0, 1, 1], [], []>} : vector<8x32xf32>, vector<32x32xf32>, vector<8x32xf32> -> vector<8x32xf32>
    %cst_27 = arith.constant dense<0.000000e+00> : vector<8x32xf32>
    %41 = tpu.matmul %39, %8, %cst_27 {dimension_numbers = #tpu.dot_dimension_numbers<[1], [0], [0], [1], [0, 0, 1, 1], [], []>} : vector<8x32xf32>, vector<32x32xf32>, vector<8x32xf32> -> vector<8x32xf32>
    %42 = vector.broadcast %9 : vector<1x32xf32> to vector<8x32xf32>
    %43 = arith.addf %41, %42 : vector<8x32xf32>
    %44 = arith.addf %43, %40 : vector<8x32xf32>
    %cst_28 = arith.constant 0.000000e+00 : f32
    %45 = vector.broadcast %cst_28 : f32 to vector<8x32xf32>
    %46 = arith.maximumf %44, %45 : vector<8x32xf32>
    %cst_29 = arith.constant dense<0.000000e+00> : vector<8x32xf32>
    %47 = tpu.matmul %39, %6, %cst_29 {dimension_numbers = #tpu.dot_dimension_numbers<[1], [0], [0], [1], [0, 0, 1, 1], [], []>} : vector<8x32xf32>, vector<32x32xf32>, vector<8x32xf32> -> vector<8x32xf32>
    %48 = vector.extract_strided_slice %5 {offsets = [24, 0], sizes = [8, 32], strides = [1, 1]} : vector<64x32xf32> to vector<8x32xf32>
    %49 = arith.addf %48, %47 : vector<8x32xf32>
    %cst_30 = arith.constant 0.000000e+00 : f32
    %50 = vector.broadcast %cst_30 : f32 to vector<8x32xf32>
    %51 = arith.maximumf %49, %50 : vector<8x32xf32>
    %cst_31 = arith.constant dense<0.000000e+00> : vector<8x32xf32>
    %52 = tpu.matmul %46, %7, %cst_31 {dimension_numbers = #tpu.dot_dimension_numbers<[1], [0], [0], [1], [0, 0, 1, 1], [], []>} : vector<8x32xf32>, vector<32x32xf32>, vector<8x32xf32> -> vector<8x32xf32>
    %cst_32 = arith.constant dense<0.000000e+00> : vector<8x32xf32>
    %53 = tpu.matmul %51, %8, %cst_32 {dimension_numbers = #tpu.dot_dimension_numbers<[1], [0], [0], [1], [0, 0, 1, 1], [], []>} : vector<8x32xf32>, vector<32x32xf32>, vector<8x32xf32> -> vector<8x32xf32>
    %54 = vector.broadcast %9 : vector<1x32xf32> to vector<8x32xf32>
    %55 = arith.addf %53, %54 : vector<8x32xf32>
    %56 = arith.addf %55, %52 : vector<8x32xf32>
    %cst_33 = arith.constant 0.000000e+00 : f32
    %57 = vector.broadcast %cst_33 : f32 to vector<8x32xf32>
    %58 = arith.maximumf %56, %57 : vector<8x32xf32>
    %cst_34 = arith.constant dense<0.000000e+00> : vector<8x32xf32>
    %59 = tpu.matmul %51, %6, %cst_34 {dimension_numbers = #tpu.dot_dimension_numbers<[1], [0], [0], [1], [0, 0, 1, 1], [], []>} : vector<8x32xf32>, vector<32x32xf32>, vector<8x32xf32> -> vector<8x32xf32>
    %60 = vector.extract_strided_slice %5 {offsets = [32, 0], sizes = [8, 32], strides = [1, 1]} : vector<64x32xf32> to vector<8x32xf32>
    %61 = arith.addf %60, %59 : vector<8x32xf32>
    %cst_35 = arith.constant 0.000000e+00 : f32
    %62 = vector.broadcast %cst_35 : f32 to vector<8x32xf32>
    %63 = arith.maximumf %61, %62 : vector<8x32xf32>
    %cst_36 = arith.constant dense<0.000000e+00> : vector<8x32xf32>
    %64 = tpu.matmul %58, %7, %cst_36 {dimension_numbers = #tpu.dot_dimension_numbers<[1], [0], [0], [1], [0, 0, 1, 1], [], []>} : vector<8x32xf32>, vector<32x32xf32>, vector<8x32xf32> -> vector<8x32xf32>
    %cst_37 = arith.constant dense<0.000000e+00> : vector<8x32xf32>
    %65 = tpu.matmul %63, %8, %cst_37 {dimension_numbers = #tpu.dot_dimension_numbers<[1], [0], [0], [1], [0, 0, 1, 1], [], []>} : vector<8x32xf32>, vector<32x32xf32>, vector<8x32xf32> -> vector<8x32xf32>
    %66 = vector.broadcast %9 : vector<1x32xf32> to vector<8x32xf32>
    %67 = arith.addf %65, %66 : vector<8x32xf32>
    %68 = arith.addf %67, %64 : vector<8x32xf32>
    %cst_38 = arith.constant 0.000000e+00 : f32
    %69 = vector.broadcast %cst_38 : f32 to vector<8x32xf32>
    %70 = arith.maximumf %68, %69 : vector<8x32xf32>
    %cst_39 = arith.constant dense<0.000000e+00> : vector<8x32xf32>
    %71 = tpu.matmul %63, %6, %cst_39 {dimension_numbers = #tpu.dot_dimension_numbers<[1], [0], [0], [1], [0, 0, 1, 1], [], []>} : vector<8x32xf32>, vector<32x32xf32>, vector<8x32xf32> -> vector<8x32xf32>
    %72 = vector.extract_strided_slice %5 {offsets = [40, 0], sizes = [8, 32], strides = [1, 1]} : vector<64x32xf32> to vector<8x32xf32>
    %73 = arith.addf %72, %71 : vector<8x32xf32>
    %cst_40 = arith.constant 0.000000e+00 : f32
    %74 = vector.broadcast %cst_40 : f32 to vector<8x32xf32>
    %75 = arith.maximumf %73, %74 : vector<8x32xf32>
    %cst_41 = arith.constant dense<0.000000e+00> : vector<8x32xf32>
    %76 = tpu.matmul %70, %7, %cst_41 {dimension_numbers = #tpu.dot_dimension_numbers<[1], [0], [0], [1], [0, 0, 1, 1], [], []>} : vector<8x32xf32>, vector<32x32xf32>, vector<8x32xf32> -> vector<8x32xf32>
    %cst_42 = arith.constant dense<0.000000e+00> : vector<8x32xf32>
    %77 = tpu.matmul %75, %8, %cst_42 {dimension_numbers = #tpu.dot_dimension_numbers<[1], [0], [0], [1], [0, 0, 1, 1], [], []>} : vector<8x32xf32>, vector<32x32xf32>, vector<8x32xf32> -> vector<8x32xf32>
    %78 = vector.broadcast %9 : vector<1x32xf32> to vector<8x32xf32>
    %79 = arith.addf %77, %78 : vector<8x32xf32>
    %80 = arith.addf %79, %76 : vector<8x32xf32>
    %cst_43 = arith.constant 0.000000e+00 : f32
    %81 = vector.broadcast %cst_43 : f32 to vector<8x32xf32>
    %82 = arith.maximumf %80, %81 : vector<8x32xf32>
    %cst_44 = arith.constant dense<0.000000e+00> : vector<8x32xf32>
    %83 = tpu.matmul %75, %6, %cst_44 {dimension_numbers = #tpu.dot_dimension_numbers<[1], [0], [0], [1], [0, 0, 1, 1], [], []>} : vector<8x32xf32>, vector<32x32xf32>, vector<8x32xf32> -> vector<8x32xf32>
    %84 = vector.extract_strided_slice %5 {offsets = [48, 0], sizes = [8, 32], strides = [1, 1]} : vector<64x32xf32> to vector<8x32xf32>
    %85 = arith.addf %84, %83 : vector<8x32xf32>
    %cst_45 = arith.constant 0.000000e+00 : f32
    %86 = vector.broadcast %cst_45 : f32 to vector<8x32xf32>
    %87 = arith.maximumf %85, %86 : vector<8x32xf32>
    %cst_46 = arith.constant dense<0.000000e+00> : vector<8x32xf32>
    %88 = tpu.matmul %82, %7, %cst_46 {dimension_numbers = #tpu.dot_dimension_numbers<[1], [0], [0], [1], [0, 0, 1, 1], [], []>} : vector<8x32xf32>, vector<32x32xf32>, vector<8x32xf32> -> vector<8x32xf32>
    %cst_47 = arith.constant dense<0.000000e+00> : vector<8x32xf32>
    %89 = tpu.matmul %87, %8, %cst_47 {dimension_numbers = #tpu.dot_dimension_numbers<[1], [0], [0], [1], [0, 0, 1, 1], [], []>} : vector<8x32xf32>, vector<32x32xf32>, vector<8x32xf32> -> vector<8x32xf32>
    %90 = vector.broadcast %9 : vector<1x32xf32> to vector<8x32xf32>
    %91 = arith.addf %89, %90 : vector<8x32xf32>
    %92 = arith.addf %91, %88 : vector<8x32xf32>
    %cst_48 = arith.constant 0.000000e+00 : f32
    %93 = vector.broadcast %cst_48 : f32 to vector<8x32xf32>
    %94 = arith.maximumf %92, %93 : vector<8x32xf32>
    %cst_49 = arith.constant dense<0.000000e+00> : vector<8x32xf32>
    %95 = tpu.matmul %87, %6, %cst_49 {dimension_numbers = #tpu.dot_dimension_numbers<[1], [0], [0], [1], [0, 0, 1, 1], [], []>} : vector<8x32xf32>, vector<32x32xf32>, vector<8x32xf32> -> vector<8x32xf32>
    %96 = vector.extract_strided_slice %5 {offsets = [56, 0], sizes = [8, 32], strides = [1, 1]} : vector<64x32xf32> to vector<8x32xf32>
    %97 = arith.addf %96, %95 : vector<8x32xf32>
    %cst_50 = arith.constant 0.000000e+00 : f32
    %98 = vector.broadcast %cst_50 : f32 to vector<8x32xf32>
    %99 = arith.maximumf %97, %98 : vector<8x32xf32>
    %cst_51 = arith.constant dense<0.000000e+00> : vector<8x32xf32>
    %100 = tpu.matmul %94, %7, %cst_51 {dimension_numbers = #tpu.dot_dimension_numbers<[1], [0], [0], [1], [0, 0, 1, 1], [], []>} : vector<8x32xf32>, vector<32x32xf32>, vector<8x32xf32> -> vector<8x32xf32>
    %cst_52 = arith.constant dense<0.000000e+00> : vector<8x32xf32>
    %101 = tpu.matmul %99, %8, %cst_52 {dimension_numbers = #tpu.dot_dimension_numbers<[1], [0], [0], [1], [0, 0, 1, 1], [], []>} : vector<8x32xf32>, vector<32x32xf32>, vector<8x32xf32> -> vector<8x32xf32>
    %102 = vector.broadcast %9 : vector<1x32xf32> to vector<8x32xf32>
    %103 = arith.addf %101, %102 : vector<8x32xf32>
    %104 = arith.addf %103, %100 : vector<8x32xf32>
    %cst_53 = arith.constant 0.000000e+00 : f32
    %105 = vector.broadcast %cst_53 : f32 to vector<8x32xf32>
    %106 = arith.maximumf %104, %105 : vector<8x32xf32>
    %c0_54 = arith.constant 0 : index
    %c0_55 = arith.constant 0 : index
    %107 = vector.load %arg8[%c0_54, %c0_55] : memref<32x128xf32, #tpu.memory_space<vmem>>, vector<32x128xf32>
    %cst_56 = arith.constant dense<0.000000e+00> : vector<8x128xf32>
    %108 = tpu.matmul %106, %107, %cst_56 {dimension_numbers = #tpu.dot_dimension_numbers<[1], [0], [0], [1], [0, 0, 1, 1], [], []>} : vector<8x32xf32>, vector<32x128xf32>, vector<8x128xf32> -> vector<8x128xf32>
    %c0_57 = arith.constant 0 : index
    %c0_58 = arith.constant 0 : index
    %109 = vector.load %arg9[%c0_57, %c0_58] : memref<1x128xf32, #tpu.memory_space<vmem>>, vector<1x128xf32>
    %110 = vector.broadcast %109 : vector<1x128xf32> to vector<8x128xf32>
    %111 = arith.addf %108, %110 : vector<8x128xf32>
    %c0_59 = arith.constant 0 : index
    %c0_60 = arith.constant 0 : index
    %112 = vector.load %arg10[%c0_59, %c0_60] : memref<8x128xf32, #tpu.memory_space<vmem>>, vector<8x128xf32>
    tpu.vector_store %arg10[%c0_59, %c0_60], %111 {strides = array<i32>} : memref<8x128xf32, #tpu.memory_space<vmem>>, vector<8x128xf32>,
    return
  }
  func.func @transform_0(%arg0: i32) -> (i32, i32) {
    %c0_i32 = arith.constant 0 : i32
    %c0_i32_0 = arith.constant 0 : i32
    %c0_i32_1 = arith.constant 0 : i32
    return %c0_i32, %c0_i32_0 : i32, i32
  }
  func.func @transform_1(%arg0: i32) -> (i32, i32) {
    %c0_i32 = arith.constant 0 : i32
    %c0_i32_0 = arith.constant 0 : i32
    %c0_i32_1 = arith.constant 0 : i32
    return %c0_i32, %c0_i32_0 : i32, i32
  }
  func.func @transform_2(%arg0: i32) -> (i32, i32) {
    %c0_i32 = arith.constant 0 : i32
    %c0_i32_0 = arith.constant 0 : i32
    %c0_i32_1 = arith.constant 0 : i32
    return %c0_i32, %c0_i32_0 : i32, i32
  }
  func.func @transform_3(%arg0: i32) -> (i32, i32) {
    %c0_i32 = arith.constant 0 : i32
    %c0_i32_0 = arith.constant 0 : i32
    %c0_i32_1 = arith.constant 0 : i32
    return %c0_i32, %c0_i32_0 : i32, i32
  }
  func.func @transform_4(%arg0: i32) -> (i32, i32) {
    %c0_i32 = arith.constant 0 : i32
    %c0_i32_0 = arith.constant 0 : i32
    %c0_i32_1 = arith.constant 0 : i32
    return %c0_i32, %c0_i32_0 : i32, i32
  }
  func.func @transform_5(%arg0: i32) -> (i32, i32) {
    %c0_i32 = arith.constant 0 : i32
    %c0_i32_0 = arith.constant 0 : i32
    %c0_i32_1 = arith.constant 0 : i32
    return %c0_i32, %c0_i32_0 : i32, i32
  }
  func.func @transform_6(%arg0: i32) -> (i32, i32) {
    %c0_i32 = arith.constant 0 : i32
    %c0_i32_0 = arith.constant 0 : i32
    %c0_i32_1 = arith.constant 0 : i32
    return %c0_i32, %c0_i32_0 : i32, i32
  }
  func.func @transform_7(%arg0: i32) -> (i32, i32) {
    %c0_i32 = arith.constant 0 : i32
    %c0_i32_0 = arith.constant 0 : i32
    %c0_i32_1 = arith.constant 0 : i32
    return %c0_i32, %c0_i32_0 : i32, i32
  }
  func.func @transform_8(%arg0: i32) -> (i32, i32) {
    %c0_i32 = arith.constant 0 : i32
    %c0_i32_0 = arith.constant 0 : i32
    %c0_i32_1 = arith.constant 0 : i32
    return %c0_i32, %c0_i32_0 : i32, i32
  }
  func.func @transform_9(%arg0: i32) -> (i32, i32) {
    %c0_i32 = arith.constant 0 : i32
    %c0_i32_0 = arith.constant 0 : i32
    %c0_i32_1 = arith.constant 0 : i32
    return %c0_i32, %c0_i32_0 : i32, i32
  }
}

</mosaic_0001>

<llo_original>
// kernel: tpu_custom_call.1
$region0: #{tpu_custom_call.1}
  #allocation0 [shape = 'u32[]', space=smem, size = 0x4, offset = 0x4, fixed_abs, tag = 'smem constant byte address 0x4 - core index']
  #allocation1 [shape = 'u32[144,128]{1,0:T(1,128)}', space=vmem, size = 0x12000, scoped, tag = 'internal scratch']
  %s0 = inlined_call_operand.vmem [shape: f32[64,16], index: 0, kind: input, shape index: {}]
  %s1 = inlined_call_operand.hbm [shape: f32[16,32], index: 1, kind: input, shape index: {}]
  %s2 = inlined_call_operand.vmem [shape: f32[32,32], index: 2, kind: input, shape index: {}]
  %s3 = inlined_call_operand.vmem [shape: f32[1,32], index: 3, kind: input, shape index: {}]
  %s4 = inlined_call_operand.vmem [shape: f32[32,32], index: 4, kind: input, shape index: {}]
  %s5 = inlined_call_operand.vmem [shape: f32[32,32], index: 5, kind: input, shape index: {}]
  %s6 = inlined_call_operand.vmem [shape: f32[1,32], index: 6, kind: input, shape index: {}]
  %s7 = inlined_call_operand.hbm [shape: f32[32,128], index: 7, kind: input, shape index: {}]
  %s8 = inlined_call_operand.vmem [shape: f32[1,128], index: 8, kind: input, shape index: {}]
  %s9 = inlined_call_operand.hbm [shape: f32[8,128], index: 9, kind: output, shape index: {}]
  %s10 = sld [smem:[#allocation0]]
  $region54: #{tpu_custom_call.1} parent=0
    _
  %s12 = ssub.s32 1, %s10
  %s13 = scalar_select 0, %s12, %s10
  $region1: #{tpu_custom_call.1} parent=0
    #allocation2 [shape = 'u8[8192]{0}', space=vmem, size = 0x2000, scoped, tag = 'input window, operand 1, single buffered']
    #allocation3 [shape = 's32[1]{0}', space=sflag, size = 0x4, scoped, tag = 'scoped memory for tpu_custom_call.1']
    #allocation4 [shape = 's32[1]{0}', space=sflag, size = 0x4, scoped, tag = 'scoped memory for tpu_custom_call.1']
    #allocation5 [shape = 'u8[16384]{0}', space=vmem, size = 0x4000, scoped, tag = 'input window, operand 7, single buffered']
    #allocation6 [shape = 's32[1]{0}', space=sflag, size = 0x4, scoped, tag = 'scoped memory for tpu_custom_call.1']
    #allocation7 [shape = 'u8[4096]{0}', space=vmem, size = 0x1000, scoped, tag = 'output window, operand 0, single buffered']
    %14 = vsyncpa [#allocation3], 0
    %15 = vsyncpa [#allocation6], 0
    %16 = vsyncpa [#allocation4], 0
    // Predicated region
    $region2: #{tpu_custom_call.1} parent=1 // pred_check
      _
    $region3: #{tpu_custom_call.1} parent=1 // pred_check_branch
      %18 = sbr.rel (0) target = $region5
    $region4: #{tpu_custom_call.1} parent=1 // pred_region
      _
    $region5: #{tpu_custom_call.1} parent=1 // pred_fallthru
      _
    // Predicated region
    $region6: #{tpu_custom_call.1} parent=1 // pred_check
      _
    $region7: #{tpu_custom_call.1} parent=1 // pred_check_branch
      %20 = sbr.rel (0) target = $region9
    $region8: #{tpu_custom_call.1} parent=1 // pred_region
      %s22 = ssub.s32 256, 256
      %23 = vsyncadd [#allocation3], %s22
      %s24 = sshll.u32 [#allocation2], 4
      %s25 = int_to_ptr.vmem [resolvable:$true] %s24
      %30 = dma.hbm_to_vmem [thread:$0]  %s1, 256, %s25, [#allocation3], 128, 128, 8
    $region9: #{tpu_custom_call.1} parent=1 // pred_fallthru
      _
    // Predicated region
    $region10: #{tpu_custom_call.1} parent=1 // pred_check
      _
    $region11: #{tpu_custom_call.1} parent=1 // pred_check_branch
      %32 = sbr.rel (0) target = $region13
    $region12: #{tpu_custom_call.1} parent=1 // pred_region
      _
    $region13: #{tpu_custom_call.1} parent=1 // pred_fallthru
      _
    // Predicated region
    $region14: #{tpu_custom_call.1} parent=1 // pred_check
      _
    $region15: #{tpu_custom_call.1} parent=1 // pred_check_branch
      %34 = sbr.rel (0) target = $region17
    $region16: #{tpu_custom_call.1} parent=1 // pred_region
      _
    $region17: #{tpu_custom_call.1} parent=1 // pred_fallthru
      _
    // Predicated region
    $region18: #{tpu_custom_call.1} parent=1 // pred_check
      _
    $region19: #{tpu_custom_call.1} parent=1 // pred_check_branch
      %36 = sbr.rel (0) target = $region21
    $region20: #{tpu_custom_call.1} parent=1 // pred_region
      _
    $region21: #{tpu_custom_call.1} parent=1 // pred_fallthru
      _
    // Predicated region
    $region22: #{tpu_custom_call.1} parent=1 // pred_check
      _
    $region23: #{tpu_custom_call.1} parent=1 // pred_check_branch
      %38 = sbr.rel (0) target = $region25
    $region24: #{tpu_custom_call.1} parent=1 // pred_region
      _
    $region25: #{tpu_custom_call.1} parent=1 // pred_fallthru
      _
    // Predicated region
    $region26: #{tpu_custom_call.1} parent=1 // pred_check
      _
    $region27: #{tpu_custom_call.1} parent=1 // pred_check_branch
      %40 = sbr.rel (0) target = $region29
    $region28: #{tpu_custom_call.1} parent=1 // pred_region
      _
    $region29: #{tpu_custom_call.1} parent=1 // pred_fallthru
      _
    // Predicated region
    $region30: #{tpu_custom_call.1} parent=1 // pred_check
      _
    $region31: #{tpu_custom_call.1} parent=1 // pred_check_branch
      %42 = sbr.rel (0) target = $region33
    $region32: #{tpu_custom_call.1} parent=1 // pred_region
      %s44 = ssub.s32 512, 512
      %45 = vsyncadd [#allocation6], %s44
      %s46 = sshll.u32 [#allocation5], 4
      %s47 = int_to_ptr.vmem [resolvable:$true] %s46
      %52 = dma.hbm_to_vmem [thread:$0]  %s7, 512, %s47, [#allocation6], 128, 128, 8
    $region33: #{tpu_custom_call.1} parent=1 // pred_fallthru
      _
    // Predicated region
    $region34: #{tpu_custom_call.1} parent=1 // pred_check
      _
    $region35: #{tpu_custom_call.1} parent=1 // pred_check_branch
      %54 = sbr.rel (0) target = $region37
    $region36: #{tpu_custom_call.1} parent=1 // pred_region
      _
    $region37: #{tpu_custom_call.1} parent=1 // pred_fallthru
      _
    // Predicated region
    $region38: #{tpu_custom_call.1} parent=1 // pred_check
      _
    $region39: #{tpu_custom_call.1} parent=1 // pred_check_branch
      %56 = sbr.rel (0) target = $region41
    $region40: #{tpu_custom_call.1} parent=1 // pred_region
      %57 = dma.done [#allocation3], 256
    $region41: #{tpu_custom_call.1} parent=1 // pred_fallthru
      _
    // Predicated region
    $region42: #{tpu_custom_call.1} parent=1 // pred_check
      _
    $region43: #{tpu_custom_call.1} parent=1 // pred_check_branch
      %59 = sbr.rel (0) target = $region45
    $region44: #{tpu_custom_call.1} parent=1 // pred_region
      %60 = dma.done [#allocation6], 512
    $region45: #{tpu_custom_call.1} parent=1 // pred_fallthru
      _
    %v61 = vld [vmem:[%s0] sm:$0xff]
    %v62 = vld [vmem:[%s0 + $0x8] sm:$0xff]
    %v63 = vld [vmem:[%s0 + $0x10] sm:$0xff]
    %v64 = vld [vmem:[%s0 + $0x18] sm:$0xff]
    %v65 = vld [vmem:[%s0 + $0x20] sm:$0xff]
    %v66 = vld [vmem:[%s0 + $0x28] sm:$0xff]
    %v67 = vld [vmem:[%s0 + $0x30] sm:$0xff]
    %v68 = vld [vmem:[%s0 + $0x38] sm:$0xff]
    %v69 = vld [vmem:[#allocation2] sm:$0xff]
    %v70 = vld [vmem:[#allocation2 + $0x8] sm:$0xff]
    %v71 = vld [vmem:[%s3] sm:$0x1]
    %v73 = vlaneseq
    %v74 = vshrl.u32 %v73, 7
    %v75 = vsub.s32 0, %v74
    %v76 = vrot.slane %v71, %v75
    %vm78 = vcmask 130048
    %v80 = vsel %vm78, %v61, 0
    %v83 = vsel %vm78, %v62, 0
    %v86 = vsel %vm78, %v63, 0
    %v89 = vsel %vm78, %v64, 0
    %v92 = vsel %vm78, %v65, 0
    %v95 = vsel %vm78, %v66, 0
    %v98 = vsel %vm78, %v67, 0
    %v101 = vsel %vm78, %v68, 0
    %103 = vmatprep.subr.mxu0 0.0
    %104 = vmatpush1.msra.mxu0 %v69
    %105 = vmatprep.subr.mxu0 0.0
    %106 = vmatpush1.msra.mxu0 %v70
    %107 = vmatprep.subr.mxu0 0.0
    %108 = vmatpush1.msra.mxu0 0.0
    %109 = vmatprep.subr.mxu0 0.0
    %110 = vmatpush1.msra.mxu0 0.0
    %111 = vmatprep.subr.mxu0 0.0
    %112 = vmatpush1.msra.mxu0 0.0
    %113 = vmatprep.subr.mxu0 0.0
    %114 = vmatpush1.msra.mxu0 0.0
    %115 = vmatprep.subr.mxu0 0.0
    %116 = vmatpush1.msra.mxu0 0.0
    %117 = vmatprep.subr.mxu0 0.0
    %118 = vmatpush1.msra.mxu0 0.0
    %119 = vmatprep.subr.mxu0 0.0
    %120 = vmatpush1.msra.mxu0 0.0
    %121 = vmatprep.subr.mxu0 0.0
    %122 = vmatpush1.msra.mxu0 0.0
    %123 = vmatprep.subr.mxu0 0.0
    %124 = vmatpush1.msra.mxu0 0.0
    %125 = vmatprep.subr.mxu0 0.0
    %126 = vmatpush1.msra.mxu0 0.0
    %127 = vmatprep.subr.mxu0 0.0
    %128 = vmatpush1.msra.mxu0 0.0
    %129 = vmatprep.subr.mxu0 0.0
    %130 = vmatpush1.msra.mxu0 0.0
    %131 = vmatprep.subr.mxu0 0.0
    %132 = vmatpush1.msra.mxu0 0.0
    %133 = vmatprep.subr.mxu0 0.0
    %134 = vmatpush1.msra.mxu0 0.0
    %135 = vmatprep.subr.mxu0 0.0
    %136 = vmatpush1.msra.mxu0 0.0
    %137 = vmatprep.subr.mxu0 0.0
    %138 = vmatpush1.msra.mxu0 0.0
    %139 = vmatprep.subr.mxu0 0.0
    %140 = vmatpush1.msra.mxu0 0.0
    %141 = vmatprep.subr.mxu0 0.0
    %142 = vmatpush1.msra.mxu0 0.0
    %143 = vmatprep.subr.mxu0 0.0
    %144 = vmatpush1.msra.mxu0 0.0
    %145 = vmatprep.subr.mxu0 0.0
    %146 = vmatpush1.msra.mxu0 0.0
    %147 = vmatprep.subr.mxu0 0.0
    %148 = vmatpush1.msra.mxu0 0.0
    %149 = vmatprep.subr.mxu0 0.0
    %150 = vmatpush1.msra.mxu0 0.0
    %151 = vmatprep.subr.mxu0 0.0
    %152 = vmatpush1.msra.mxu0 0.0
    %153 = vmatprep.subr.mxu0 0.0
    %154 = vmatpush1.msra.mxu0 0.0
    %155 = vmatprep.subr.mxu0 0.0
    %156 = vmatpush1.msra.mxu0 0.0
    %157 = vmatprep.subr.mxu0 0.0
    %158 = vmatpush1.msra.mxu0 0.0
    %159 = vmatprep.subr.mxu0 0.0
    %160 = vmatpush1.msra.mxu0 0.0
    %161 = vmatprep.subr.mxu0 0.0
    %162 = vmatpush1.msra.mxu0 0.0
    %163 = vmatprep.subr.mxu0 0.0
    %164 = vmatpush1.msra.mxu0 0.0
    %165 = vmatprep.subr.mxu0 0.0
    %166 = vmatpush1.msra.mxu0 0.0
    %167 = vmatprep.mubr.f32.mxu0 0.0
    %168 = vmatmul.mubr.f32.gmra.mrb[0].mxu0 %v80
    %v169 = vpop.f32.mrb[0].mxu0
    %v170 = vadd.f32 %v76, %v169
    %v171 = vpop.f32.mrb[0].mxu0
    %172 = vmatprep.mubr.f32.mxu0 0.0
    %173 = vmatmul.mubr.f32.gmra.mrb[0].mxu0 %v83
    %v174 = vpop.f32.mrb[0].mxu0
    %v175 = vadd.f32 %v76, %v174
    %v176 = vpop.f32.mrb[0].mxu0
    %177 = vmatprep.mubr.f32.mxu0 0.0
    %178 = vmatmul.mubr.f32.gmra.mrb[0].mxu0 %v86
    %v179 = vpop.f32.mrb[0].mxu0
    %v180 = vadd.f32 %v76, %v179
    %v181 = vpop.f32.mrb[0].mxu0
    %182 = vmatprep.mubr.f32.mxu0 0.0
    %183 = vmatmul.mubr.f32.gmra.mrb[0].mxu0 %v89
    %v184 = vpop.f32.mrb[0].mxu0
    %v185 = vadd.f32 %v76, %v184
    %v186 = vpop.f32.mrb[0].mxu0
    %187 = vmatprep.mubr.f32.mxu0 0.0
    %188 = vmatmul.mubr.f32.gmra.mrb[0].mxu0 %v92
    %v189 = vpop.f32.mrb[0].mxu0
    %v190 = vadd.f32 %v76, %v189
    %v191 = vpop.f32.mrb[0].mxu0
    %192 = vmatprep.mubr.f32.mxu0 0.0
    %193 = vmatmul.mubr.f32.gmra.mrb[0].mxu0 %v95
    %v194 = vpop.f32.mrb[0].mxu0
    %v195 = vadd.f32 %v76, %v194
    %v196 = vpop.f32.mrb[0].mxu0
    %197 = vmatprep.mubr.f32.mxu0 0.0
    %198 = vmatmul.mubr.f32.gmra.mrb[0].mxu0 %v98
    %v199 = vpop.f32.mrb[0].mxu0
    %v200 = vadd.f32 %v76, %v199
    %v201 = vpop.f32.mrb[0].mxu0
    %202 = vmatprep.mubr.f32.mxu0 0.0
    %203 = vmatmul.mubr.f32.gmra.mrb[0].mxu0 %v101
    %v204 = vpop.f32.mrb[0].mxu0
    %v205 = vadd.f32 %v76, %v204
    %v206 = vpop.f32.mrb[0].mxu0
    %207 = vdwg.mxu0
    %v208 = vld [vmem:[%s2] sm:$0xff]
    %v209 = vld [vmem:[%s2 + $0x8] sm:$0xff]
    %v210 = vld [vmem:[%s2 + $0x10] sm:$0xff]
    %v211 = vld [vmem:[%s2 + $0x18] sm:$0xff]
    %v212 = vld [vmem:[%s5] sm:$0xff]
    %v213 = vld [vmem:[%s5 + $0x8] sm:$0xff]
    %v214 = vld [vmem:[%s5 + $0x10] sm:$0xff]
    %v215 = vld [vmem:[%s5 + $0x18] sm:$0xff]
    %v216 = vld [vmem:[%s4] sm:$0xff]
    %v217 = vld [vmem:[%s4 + $0x8] sm:$0xff]
    %v218 = vld [vmem:[%s4 + $0x10] sm:$0xff]
    %v219 = vld [vmem:[%s4 + $0x18] sm:$0xff]
    %v220 = vld [vmem:[%s6] sm:$0x1]
    %vm221 = vcmask 261120
    %v223 = vsel %vm221, 0.0, 0
    %225 = vmatprep.subr.mxu0 0.0
    %226 = vmatpush1.msra.mxu0 %v208
    %227 = vmatprep.subr.mxu0 0.0
    %228 = vmatpush1.msra.mxu0 %v209
    %229 = vmatprep.subr.mxu0 0.0
    %230 = vmatpush1.msra.mxu0 %v210
    %231 = vmatprep.subr.mxu0 0.0
    %232 = vmatpush1.msra.mxu0 %v211
    %233 = vmatprep.subr.mxu0 0.0
    %234 = vmatpush1.msra.mxu0 0.0
    %235 = vmatprep.subr.mxu0 0.0
    %236 = vmatpush1.msra.mxu0 0.0
    %237 = vmatprep.subr.mxu0 0.0
    %238 = vmatpush1.msra.mxu0 0.0
    %239 = vmatprep.subr.mxu0 0.0
    %240 = vmatpush1.msra.mxu0 0.0
    %241 = vmatprep.subr.mxu0 0.0
    %242 = vmatpush1.msra.mxu0 0.0
    %243 = vmatprep.subr.mxu0 0.0
    %244 = vmatpush1.msra.mxu0 0.0
    %245 = vmatprep.subr.mxu0 0.0
    %246 = vmatpush1.msra.mxu0 0.0
    %247 = vmatprep.subr.mxu0 0.0
    %248 = vmatpush1.msra.mxu0 0.0
    %249 = vmatprep.subr.mxu0 0.0
    %250 = vmatpush1.msra.mxu0 0.0
    %251 = vmatprep.subr.mxu0 0.0
    %252 = vmatpush1.msra.mxu0 0.0
    %253 = vmatprep.subr.mxu0 0.0
    %254 = vmatpush1.msra.mxu0 0.0
    %255 = vmatprep.subr.mxu0 0.0
    %256 = vmatpush1.msra.mxu0 0.0
    %257 = vmatprep.subr.mxu0 0.0
    %258 = vmatpush1.msra.mxu0 0.0
    %259 = vmatprep.subr.mxu0 0.0
    %260 = vmatpush1.msra.mxu0 0.0
    %261 = vmatprep.subr.mxu0 0.0
    %262 = vmatpush1.msra.mxu0 0.0
    %263 = vmatprep.subr.mxu0 0.0
    %264 = vmatpush1.msra.mxu0 0.0
    %265 = vmatprep.subr.mxu0 0.0
    %266 = vmatpush1.msra.mxu0 0.0
    %267 = vmatprep.subr.mxu0 0.0
    %268 = vmatpush1.msra.mxu0 0.0
    %269 = vmatprep.subr.mxu0 0.0
    %270 = vmatpush1.msra.mxu0 0.0
    %271 = vmatprep.subr.mxu0 0.0
    %272 = vmatpush1.msra.mxu0 0.0
    %273 = vmatprep.subr.mxu0 0.0
    %274 = vmatpush1.msra.mxu0 0.0
    %275 = vmatprep.subr.mxu0 0.0
    %276 = vmatpush1.msra.mxu0 0.0
    %277 = vmatprep.subr.mxu0 0.0
    %278 = vmatpush1.msra.mxu0 0.0
    %279 = vmatprep.subr.mxu0 0.0
    %280 = vmatpush1.msra.mxu0 0.0
    %281 = vmatprep.subr.mxu0 0.0
    %282 = vmatpush1.msra.mxu0 0.0
    %283 = vmatprep.subr.mxu0 0.0
    %284 = vmatpush1.msra.mxu0 0.0
    %285 = vmatprep.subr.mxu0 0.0
    %286 = vmatpush1.msra.mxu0 0.0
    %287 = vmatprep.subr.mxu0 0.0
    %288 = vmatpush1.msra.mxu0 0.0
    %289 = vmatprep.mubr.f32.mxu0 0.0
    %290 = vmatmul.mubr.f32.gmra.mrb[0].mxu0 %v223
    %v291 = vpop.f32.mrb[0].mxu0
    %v292 = vadd.f32 0.0, %v291
    %v293 = vpop.f32.mrb[0].mxu0
    %294 = vdwg.mxu0
    %v295 = vadd.f32 %v170, %v292
    %v296 = vmax.f32 %v295, 0.0
    %297 = vmatprep.subr.mxu0 0.0
    %298 = vmatpush1.msra.mxu0 %v212
    %299 = vmatprep.subr.mxu0 0.0
    %300 = vmatpush1.msra.mxu0 %v213
    %301 = vmatprep.subr.mxu0 0.0
    %302 = vmatpush1.msra.mxu0 %v214
    %303 = vmatprep.subr.mxu0 0.0
    %304 = vmatpush1.msra.mxu0 %v215
    %305 = vmatprep.subr.mxu0 0.0
    %306 = vmatpush1.msra.mxu0 0.0
    %307 = vmatprep.subr.mxu0 0.0
    %308 = vmatpush1.msra.mxu0 0.0
    %309 = vmatprep.subr.mxu0 0.0
    %310 = vmatpush1.msra.mxu0 0.0
    %311 = vmatprep.subr.mxu0 0.0
    %312 = vmatpush1.msra.mxu0 0.0
    %313 = vmatprep.subr.mxu0 0.0
    %314 = vmatpush1.msra.mxu0 0.0
    %315 = vmatprep.subr.mxu0 0.0
    %316 = vmatpush1.msra.mxu0 0.0
    %317 = vmatprep.subr.mxu0 0.0
    %318 = vmatpush1.msra.mxu0 0.0
    %319 = vmatprep.subr.mxu0 0.0
    %320 = vmatpush1.msra.mxu0 0.0
    %321 = vmatprep.subr.mxu0 0.0
    %322 = vmatpush1.msra.mxu0 0.0
    %323 = vmatprep.subr.mxu0 0.0
    %324 = vmatpush1.msra.mxu0 0.0
    %325 = vmatprep.subr.mxu0 0.0
    %326 = vmatpush1.msra.mxu0 0.0
    %327 = vmatprep.subr.mxu0 0.0
    %328 = vmatpush1.msra.mxu0 0.0
    %329 = vmatprep.subr.mxu0 0.0
    %330 = vmatpush1.msra.mxu0 0.0
    %331 = vmatprep.subr.mxu0 0.0
    %332 = vmatpush1.msra.mxu0 0.0
    %333 = vmatprep.subr.mxu0 0.0
    %334 = vmatpush1.msra.mxu0 0.0
    %335 = vmatprep.subr.mxu0 0.0
    %336 = vmatpush1.msra.mxu0 0.0
    %337 = vmatprep.subr.mxu0 0.0
    %338 = vmatpush1.msra.mxu0 0.0
    %339 = vmatprep.subr.mxu0 0.0
    %340 = vmatpush1.msra.mxu0 0.0
    %341 = vmatprep.subr.mxu0 0.0
    %342 = vmatpush1.msra.mxu0 0.0
    %343 = vmatprep.subr.mxu0 0.0
    %344 = vmatpush1.msra.mxu0 0.0
    %345 = vmatprep.subr.mxu0 0.0
    %346 = vmatpush1.msra.mxu0 0.0
    %347 = vmatprep.subr.mxu0 0.0
    %348 = vmatpush1.msra.mxu0 0.0
    %349 = vmatprep.subr.mxu0 0.0
    %350 = vmatpush1.msra.mxu0 0.0
    %351 = vmatprep.subr.mxu0 0.0
    %352 = vmatpush1.msra.mxu0 0.0
    %353 = vmatprep.subr.mxu0 0.0
    %354 = vmatpush1.msra.mxu0 0.0
    %355 = vmatprep.subr.mxu0 0.0
    %356 = vmatpush1.msra.mxu0 0.0
    %357 = vmatprep.subr.mxu0 0.0
    %358 = vmatpush1.msra.mxu0 0.0
    %359 = vmatprep.subr.mxu0 0.0
    %360 = vmatpush1.msra.mxu0 0.0
    %361 = vmatprep.mubr.f32.mxu0 0.0
    %362 = vmatmul.mubr.f32.gmra.mrb[0].mxu0 %v223
    %v363 = vpop.f32.mrb[0].mxu0
    %v364 = vadd.f32 0.0, %v363
    %v365 = vpop.f32.mrb[0].mxu0
    %366 = vdwg.mxu0
    %v368 = vlaneseq
    %v369 = vshrl.u32 %v368, 7
    %v370 = vsub.s32 0, %v369
    %v371 = vrot.slane %v220, %v370
    %v374 = vsel %vm221, %v296, 0
    %376 = vmatprep.subr.mxu0 0.0
    %377 = vmatpush1.msra.mxu0 %v216
    %378 = vmatprep.subr.mxu0 0.0
    %379 = vmatpush1.msra.mxu0 %v217
    %380 = vmatprep.subr.mxu0 0.0
    %381 = vmatpush1.msra.mxu0 %v218
    %382 = vmatprep.subr.mxu0 0.0
    %383 = vmatpush1.msra.mxu0 %v219
    %384 = vmatprep.subr.mxu0 0.0
    %385 = vmatpush1.msra.mxu0 0.0
    %386 = vmatprep.subr.mxu0 0.0
    %387 = vmatpush1.msra.mxu0 0.0
    %388 = vmatprep.subr.mxu0 0.0
    %389 = vmatpush1.msra.mxu0 0.0
    %390 = vmatprep.subr.mxu0 0.0
    %391 = vmatpush1.msra.mxu0 0.0
    %392 = vmatprep.subr.mxu0 0.0
    %393 = vmatpush1.msra.mxu0 0.0
    %394 = vmatprep.subr.mxu0 0.0
    %395 = vmatpush1.msra.mxu0 0.0
    %396 = vmatprep.subr.mxu0 0.0
    %397 = vmatpush1.msra.mxu0 0.0
    %398 = vmatprep.subr.mxu0 0.0
    %399 = vmatpush1.msra.mxu0 0.0
    %400 = vmatprep.subr.mxu0 0.0
    %401 = vmatpush1.msra.mxu0 0.0
    %402 = vmatprep.subr.mxu0 0.0
    %403 = vmatpush1.msra.mxu0 0.0
    %404 = vmatprep.subr.mxu0 0.0
    %405 = vmatpush1.msra.mxu0 0.0
    %406 = vmatprep.subr.mxu0 0.0
    %407 = vmatpush1.msra.mxu0 0.0
    %408 = vmatprep.subr.mxu0 0.0
    %409 = vmatpush1.msra.mxu0 0.0
    %410 = vmatprep.subr.mxu0 0.0
    %411 = vmatpush1.msra.mxu0 0.0
    %412 = vmatprep.subr.mxu0 0.0
    %413 = vmatpush1.msra.mxu0 0.0
    %414 = vmatprep.subr.mxu0 0.0
    %415 = vmatpush1.msra.mxu0 0.0
    %416 = vmatprep.subr.mxu0 0.0
    %417 = vmatpush1.msra.mxu0 0.0
    %418 = vmatprep.subr.mxu0 0.0
    %419 = vmatpush1.msra.mxu0 0.0
    %420 = vmatprep.subr.mxu0 0.0
    %421 = vmatpush1.msra.mxu0 0.0
    %422 = vmatprep.subr.mxu0 0.0
    %423 = vmatpush1.msra.mxu0 0.0
    %424 = vmatprep.subr.mxu0 0.0
    %425 = vmatpush1.msra.mxu0 0.0
    %426 = vmatprep.subr.mxu0 0.0
    %427 = vmatpush1.msra.mxu0 0.0
    %428 = vmatprep.subr.mxu0 0.0
    %429 = vmatpush1.msra.mxu0 0.0
    %430 = vmatprep.subr.mxu0 0.0
    %431 = vmatpush1.msra.mxu0 0.0
    %432 = vmatprep.subr.mxu0 0.0
    %433 = vmatpush1.msra.mxu0 0.0
    %434 = vmatprep.subr.mxu0 0.0
    %435 = vmatpush1.msra.mxu0 0.0
    %436 = vmatprep.subr.mxu0 0.0
    %437 = vmatpush1.msra.mxu0 0.0
    %438 = vmatprep.subr.mxu0 0.0
    %439 = vmatpush1.msra.mxu0 0.0
    %440 = vmatprep.mubr.f32.mxu0 0.0
    %441 = vmatmul.mubr.f32.gmra.mrb[0].mxu0 %v374
    %v442 = vpop.f32.mrb[0].mxu0
    %v443 = vadd.f32 %v371, %v442
    %v444 = vpop.f32.mrb[0].mxu0
    %445 = vdwg.mxu0
    %v446 = vadd.f32 %v443, %v364
    %v447 = vmax.f32 %v446, 0.0
    %448 = vmatprep.subr.mxu0 0.0
    %449 = vmatpush1.msra.mxu0 %v208
    %450 = vmatprep.subr.mxu0 0.0
    %451 = vmatpush1.msra.mxu0 %v209
    %452 = vmatprep.subr.mxu0 0.0
    %453 = vmatpush1.msra.mxu0 %v210
    %454 = vmatprep.subr.mxu0 0.0
    %455 = vmatpush1.msra.mxu0 %v211
    %456 = vmatprep.subr.mxu0 0.0
    %457 = vmatpush1.msra.mxu0 0.0
    %458 = vmatprep.subr.mxu0 0.0
    %459 = vmatpush1.msra.mxu0 0.0
    %460 = vmatprep.subr.mxu0 0.0
    %461 = vmatpush1.msra.mxu0 0.0
    %462 = vmatprep.subr.mxu0 0.0
    %463 = vmatpush1.msra.mxu0 0.0
    %464 = vmatprep.subr.mxu0 0.0
    %465 = vmatpush1.msra.mxu0 0.0
    %466 = vmatprep.subr.mxu0 0.0
    %467 = vmatpush1.msra.mxu0 0.0
    %468 = vmatprep.subr.mxu0 0.0
    %469 = vmatpush1.msra.mxu0 0.0
    %470 = vmatprep.subr.mxu0 0.0
    %471 = vmatpush1.msra.mxu0 0.0
    %472 = vmatprep.subr.mxu0 0.0
    %473 = vmatpush1.msra.mxu0 0.0
    %474 = vmatprep.subr.mxu0 0.0
    %475 = vmatpush1.msra.mxu0 0.0
    %476 = vmatprep.subr.mxu0 0.0
    %477 = vmatpush1.msra.mxu0 0.0
    %478 = vmatprep.subr.mxu0 0.0
    %479 = vmatpush1.msra.mxu0 0.0
    %480 = vmatprep.subr.mxu0 0.0
    %481 = vmatpush1.msra.mxu0 0.0
    %482 = vmatprep.subr.mxu0 0.0
    %483 = vmatpush1.msra.mxu0 0.0
    %484 = vmatprep.subr.mxu0 0.0
    %485 = vmatpush1.msra.mxu0 0.0
    %486 = vmatprep.subr.mxu0 0.0
    %487 = vmatpush1.msra.mxu0 0.0
    %488 = vmatprep.subr.mxu0 0.0
    %489 = vmatpush1.msra.mxu0 0.0
    %490 = vmatprep.subr.mxu0 0.0
    %491 = vmatpush1.msra.mxu0 0.0
    %492 = vmatprep.subr.mxu0 0.0
    %493 = vmatpush1.msra.mxu0 0.0
    %494 = vmatprep.subr.mxu0 0.0
    %495 = vmatpush1.msra.mxu0 0.0
    %496 = vmatprep.subr.mxu0 0.0
    %497 = vmatpush1.msra.mxu0 0.0
    %498 = vmatprep.subr.mxu0 0.0
    %499 = vmatpush1.msra.mxu0 0.0
    %500 = vmatprep.subr.mxu0 0.0
    %501 = vmatpush1.msra.mxu0 0.0
    %502 = vmatprep.subr.mxu0 0.0
    %503 = vmatpush1.msra.mxu0 0.0
    %504 = vmatprep.subr.mxu0 0.0
    %505 = vmatpush1.msra.mxu0 0.0
    %506 = vmatprep.subr.mxu0 0.0
    %507 = vmatpush1.msra.mxu0 0.0
    %508 = vmatprep.subr.mxu0 0.0
    %509 = vmatpush1.msra.mxu0 0.0
    %510 = vmatprep.subr.mxu0 0.0
    %511 = vmatpush1.msra.mxu0 0.0
    %512 = vmatprep.mubr.f32.mxu0 0.0
    %513 = vmatmul.mubr.f32.gmra.mrb[0].mxu0 %v374
    %v514 = vpop.f32.mrb[0].mxu0
    %v515 = vadd.f32 0.0, %v514
    %v516 = vpop.f32.mrb[0].mxu0
    %517 = vdwg.mxu0
    %v518 = vadd.f32 %v175, %v515
    %v519 = vmax.f32 %v518, 0.0
    %v521 = vsel %vm221, %v447, 0
    %523 = vmatprep.subr.mxu0 0.0
    %524 = vmatpush1.msra.mxu0 %v212
    %525 = vmatprep.subr.mxu0 0.0
    %526 = vmatpush1.msra.mxu0 %v213
    %527 = vmatprep.subr.mxu0 0.0
    %528 = vmatpush1.msra.mxu0 %v214
    %529 = vmatprep.subr.mxu0 0.0
    %530 = vmatpush1.msra.mxu0 %v215
    %531 = vmatprep.subr.mxu0 0.0
    %532 = vmatpush1.msra.mxu0 0.0
    %533 = vmatprep.subr.mxu0 0.0
    %534 = vmatpush1.msra.mxu0 0.0
    %535 = vmatprep.subr.mxu0 0.0
    %536 = vmatpush1.msra.mxu0 0.0
    %537 = vmatprep.subr.mxu0 0.0
    %538 = vmatpush1.msra.mxu0 0.0
    %539 = vmatprep.subr.mxu0 0.0
    %540 = vmatpush1.msra.mxu0 0.0
    %541 = vmatprep.subr.mxu0 0.0
    %542 = vmatpush1.msra.mxu0 0.0
    %543 = vmatprep.subr.mxu0 0.0
    %544 = vmatpush1.msra.mxu0 0.0
    %545 = vmatprep.subr.mxu0 0.0
    %546 = vmatpush1.msra.mxu0 0.0
    %547 = vmatprep.subr.mxu0 0.0
    %548 = vmatpush1.msra.mxu0 0.0
    %549 = vmatprep.subr.mxu0 0.0
    %550 = vmatpush1.msra.mxu0 0.0
    %551 = vmatprep.subr.mxu0 0.0
    %552 = vmatpush1.msra.mxu0 0.0
    %553 = vmatprep.subr.mxu0 0.0
    %554 = vmatpush1.msra.mxu0 0.0
    %555 = vmatprep.subr.mxu0 0.0
    %556 = vmatpush1.msra.mxu0 0.0
    %557 = vmatprep.subr.mxu0 0.0
    %558 = vmatpush1.msra.mxu0 0.0
    %559 = vmatprep.subr.mxu0 0.0
    %560 = vmatpush1.msra.mxu0 0.0
    %561 = vmatprep.subr.mxu0 0.0
    %562 = vmatpush1.msra.mxu0 0.0
    %563 = vmatprep.subr.mxu0 0.0
    %564 = vmatpush1.msra.mxu0 0.0
    %565 = vmatprep.subr.mxu0 0.0
    %566 = vmatpush1.msra.mxu0 0.0
    %567 = vmatprep.subr.mxu0 0.0
    %568 = vmatpush1.msra.mxu0 0.0
    %569 = vmatprep.subr.mxu0 0.0
    %570 = vmatpush1.msra.mxu0 0.0
    %571 = vmatprep.subr.mxu0 0.0
    %572 = vmatpush1.msra.mxu0 0.0
    %573 = vmatprep.subr.mxu0 0.0
    %574 = vmatpush1.msra.mxu0 0.0
    %575 = vmatprep.subr.mxu0 0.0
    %576 = vmatpush1.msra.mxu0 0.0
    %577 = vmatprep.subr.mxu0 0.0
    %578 = vmatpush1.msra.mxu0 0.0
    %579 = vmatprep.subr.mxu0 0.0
    %580 = vmatpush1.msra.mxu0 0.0
    %581 = vmatprep.subr.mxu0 0.0
    %582 = vmatpush1.msra.mxu0 0.0
    %583 = vmatprep.subr.mxu0 0.0
    %584 = vmatpush1.msra.mxu0 0.0
    %585 = vmatprep.subr.mxu0 0.0
    %586 = vmatpush1.msra.mxu0 0.0
    %587 = vmatprep.mubr.f32.mxu0 0.0
    %588 = vmatmul.mubr.f32.gmra.mrb[0].mxu0 %v521
    %v589 = vpop.f32.mrb[0].mxu0
    %v590 = vadd.f32 0.0, %v589
    %v591 = vpop.f32.mrb[0].mxu0
    %592 = vdwg.mxu0
    %v594 = vsel %vm221, %v519, 0
    %596 = vmatprep.subr.mxu0 0.0
    %597 = vmatpush1.msra.mxu0 %v216
    %598 = vmatprep.subr.mxu0 0.0
    %599 = vmatpush1.msra.mxu0 %v217
    %600 = vmatprep.subr.mxu0 0.0
    %601 = vmatpush1.msra.mxu0 %v218
    %602 = vmatprep.subr.mxu0 0.0
    %603 = vmatpush1.msra.mxu0 %v219
    %604 = vmatprep.subr.mxu0 0.0
    %605 = vmatpush1.msra.mxu0 0.0
    %606 = vmatprep.subr.mxu0 0.0
    %607 = vmatpush1.msra.mxu0 0.0
    %608 = vmatprep.subr.mxu0 0.0
    %609 = vmatpush1.msra.mxu0 0.0
    %610 = vmatprep.subr.mxu0 0.0
    %611 = vmatpush1.msra.mxu0 0.0
    %612 = vmatprep.subr.mxu0 0.0
    %613 = vmatpush1.msra.mxu0 0.0
    %614 = vmatprep.subr.mxu0 0.0
    %615 = vmatpush1.msra.mxu0 0.0
    %616 = vmatprep.subr.mxu0 0.0
    %617 = vmatpush1.msra.mxu0 0.0
    %618 = vmatprep.subr.mxu0 0.0
    %619 = vmatpush1.msra.mxu0 0.0
    %620 = vmatprep.subr.mxu0 0.0
    %621 = vmatpush1.msra.mxu0 0.0
    %622 = vmatprep.subr.mxu0 0.0
    %623 = vmatpush1.msra.mxu0 0.0
    %624 = vmatprep.subr.mxu0 0.0
    %625 = vmatpush1.msra.mxu0 0.0
    %626 = vmatprep.subr.mxu0 0.0
    %627 = vmatpush1.msra.mxu0 0.0
    %628 = vmatprep.subr.mxu0 0.0
    %629 = vmatpush1.msra.mxu0 0.0
    %630 = vmatprep.subr.mxu0 0.0
    %631 = vmatpush1.msra.mxu0 0.0
    %632 = vmatprep.subr.mxu0 0.0
    %633 = vmatpush1.msra.mxu0 0.0
    %634 = vmatprep.subr.mxu0 0.0
    %635 = vmatpush1.msra.mxu0 0.0
    %636 = vmatprep.subr.mxu0 0.0
    %637 = vmatpush1.msra.mxu0 0.0
    %638 = vmatprep.subr.mxu0 0.0
    %639 = vmatpush1.msra.mxu0 0.0
    %640 = vmatprep.subr.mxu0 0.0
    %641 = vmatpush1.msra.mxu0 0.0
    %642 = vmatprep.subr.mxu0 0.0
    %643 = vmatpush1.msra.mxu0 0.0
    %644 = vmatprep.subr.mxu0 0.0
    %645 = vmatpush1.msra.mxu0 0.0
    %646 = vmatprep.subr.mxu0 0.0
    %647 = vmatpush1.msra.mxu0 0.0
    %648 = vmatprep.subr.mxu0 0.0
    %649 = vmatpush1.msra.mxu0 0.0
    %650 = vmatprep.subr.mxu0 0.0
    %651 = vmatpush1.msra.mxu0 0.0
    %652 = vmatprep.subr.mxu0 0.0
    %653 = vmatpush1.msra.mxu0 0.0
    %654 = vmatprep.subr.mxu0 0.0
    %655 = vmatpush1.msra.mxu0 0.0
    %656 = vmatprep.subr.mxu0 0.0
    %657 = vmatpush1.msra.mxu0 0.0
    %658 = vmatprep.subr.mxu0 0.0
    %659 = vmatpush1.msra.mxu0 0.0
    %660 = vmatprep.mubr.f32.mxu0 0.0
    %661 = vmatmul.mubr.f32.gmra.mrb[0].mxu0 %v594
    %v662 = vpop.f32.mrb[0].mxu0
    %v663 = vadd.f32 %v371, %v662
    %v664 = vpop.f32.mrb[0].mxu0
    %665 = vdwg.mxu0
    %v666 = vadd.f32 %v663, %v590
    %v667 = vmax.f32 %v666, 0.0
    %668 = vmatprep.subr.mxu0 0.0
    %669 = vmatpush1.msra.mxu0 %v208
    %670 = vmatprep.subr.mxu0 0.0
    %671 = vmatpush1.msra.mxu0 %v209
    %672 = vmatprep.subr.mxu0 0.0
    %673 = vmatpush1.msra.mxu0 %v210
    %674 = vmatprep.subr.mxu0 0.0
    %675 = vmatpush1.msra.mxu0 %v211
    %676 = vmatprep.subr.mxu0 0.0
    %677 = vmatpush1.msra.mxu0 0.0
    %678 = vmatprep.subr.mxu0 0.0
    %679 = vmatpush1.msra.mxu0 0.0
    %680 = vmatprep.subr.mxu0 0.0
    %681 = vmatpush1.msra.mxu0 0.0
    %682 = vmatprep.subr.mxu0 0.0
    %683 = vmatpush1.msra.mxu0 0.0
    %684 = vmatprep.subr.mxu0 0.0
    %685 = vmatpush1.msra.mxu0 0.0
    %686 = vmatprep.subr.mxu0 0.0
    %687 = vmatpush1.msra.mxu0 0.0
    %688 = vmatprep.subr.mxu0 0.0
    %689 = vmatpush1.msra.mxu0 0.0
    %690 = vmatprep.subr.mxu0 0.0
    %691 = vmatpush1.msra.mxu0 0.0
    %692 = vmatprep.subr.mxu0 0.0
    %693 = vmatpush1.msra.mxu0 0.0
    %694 = vmatprep.subr.mxu0 0.0
    %695 = vmatpush1.msra.mxu0 0.0
    %696 = vmatprep.subr.mxu0 0.0
    %697 = vmatpush1.msra.mxu0 0.0
    %698 = vmatprep.subr.mxu0 0.0
    %699 = vmatpush1.msra.mxu0 0.0
    %700 = vmatprep.subr.mxu0 0.0
    %701 = vmatpush1.msra.mxu0 0.0
    %702 = vmatprep.subr.mxu0 0.0
    %703 = vmatpush1.msra.mxu0 0.0
    %704 = vmatprep.subr.mxu0 0.0
    %705 = vmatpush1.msra.mxu0 0.0
    %706 = vmatprep.subr.mxu0 0.0
    %707 = vmatpush1.msra.mxu0 0.0
    %708 = vmatprep.subr.mxu0 0.0
    %709 = vmatpush1.msra.mxu0 0.0
    %710 = vmatprep.subr.mxu0 0.0
    %711 = vmatpush1.msra.mxu0 0.0
    %712 = vmatprep.subr.mxu0 0.0
    %713 = vmatpush1.msra.mxu0 0.0
    %714 = vmatprep.subr.mxu0 0.0
    %715 = vmatpush1.msra.mxu0 0.0
    %716 = vmatprep.subr.mxu0 0.0
    %717 = vmatpush1.msra.mxu0 0.0
    %718 = vmatprep.subr.mxu0 0.0
    %719 = vmatpush1.msra.mxu0 0.0
    %720 = vmatprep.subr.mxu0 0.0
    %721 = vmatpush1.msra.mxu0 0.0
    %722 = vmatprep.subr.mxu0 0.0
    %723 = vmatpush1.msra.mxu0 0.0
    %724 = vmatprep.subr.mxu0 0.0
    %725 = vmatpush1.msra.mxu0 0.0
    %726 = vmatprep.subr.mxu0 0.0
    %727 = vmatpush1.msra.mxu0 0.0
    %728 = vmatprep.subr.mxu0 0.0
    %729 = vmatpush1.msra.mxu0 0.0
    %730 = vmatprep.subr.mxu0 0.0
    %731 = vmatpush1.msra.mxu0 0.0
    %732 = vmatprep.mubr.f32.mxu0 0.0
    %733 = vmatmul.mubr.f32.gmra.mrb[0].mxu0 %v594
    %v734 = vpop.f32.mrb[0].mxu0
    %v735 = vadd.f32 0.0, %v734
    %v736 = vpop.f32.mrb[0].mxu0
    %737 = vdwg.mxu0
    %v738 = vadd.f32 %v180, %v735
    %v739 = vmax.f32 %v738, 0.0
    %v741 = vsel %vm221, %v667, 0
    %743 = vmatprep.subr.mxu0 0.0
    %744 = vmatpush1.msra.mxu0 %v212
    %745 = vmatprep.subr.mxu0 0.0
    %746 = vmatpush1.msra.mxu0 %v213
    %747 = vmatprep.subr.mxu0 0.0
    %748 = vmatpush1.msra.mxu0 %v214
    %749 = vmatprep.subr.mxu0 0.0
    %750 = vmatpush1.msra.mxu0 %v215
    %751 = vmatprep.subr.mxu0 0.0
    %752 = vmatpush1.msra.mxu0 0.0
    %753 = vmatprep.subr.mxu0 0.0
    %754 = vmatpush1.msra.mxu0 0.0
    %755 = vmatprep.subr.mxu0 0.0
    %756 = vmatpush1.msra.mxu0 0.0
    %757 = vmatprep.subr.mxu0 0.0
    %758 = vmatpush1.msra.mxu0 0.0
    %759 = vmatprep.subr.mxu0 0.0
    %760 = vmatpush1.msra.mxu0 0.0
    %761 = vmatprep.subr.mxu0 0.0
    %762 = vmatpush1.msra.mxu0 0.0
    %763 = vmatprep.subr.mxu0 0.0
    %764 = vmatpush1.msra.mxu0 0.0
    %765 = vmatprep.subr.mxu0 0.0
    %766 = vmatpush1.msra.mxu0 0.0
    %767 = vmatprep.subr.mxu0 0.0
    %768 = vmatpush1.msra.mxu0 0.0
    %769 = vmatprep.subr.mxu0 0.0
    %770 = vmatpush1.msra.mxu0 0.0
    %771 = vmatprep.subr.mxu0 0.0
    %772 = vmatpush1.msra.mxu0 0.0
    %773 = vmatprep.subr.mxu0 0.0
    %774 = vmatpush1.msra.mxu0 0.0
    %775 = vmatprep.subr.mxu0 0.0
    %776 = vmatpush1.msra.mxu0 0.0
    %777 = vmatprep.subr.mxu0 0.0
    %778 = vmatpush1.msra.mxu0 0.0
    %779 = vmatprep.subr.mxu0 0.0
    %780 = vmatpush1.msra.mxu0 0.0
    %781 = vmatprep.subr.mxu0 0.0
    %782 = vmatpush1.msra.mxu0 0.0
    %783 = vmatprep.subr.mxu0 0.0
    %784 = vmatpush1.msra.mxu0 0.0
    %785 = vmatprep.subr.mxu0 0.0
    %786 = vmatpush1.msra.mxu0 0.0
    %787 = vmatprep.subr.mxu0 0.0
    %788 = vmatpush1.msra.mxu0 0.0
    %789 = vmatprep.subr.mxu0 0.0
    %790 = vmatpush1.msra.mxu0 0.0
    %791 = vmatprep.subr.mxu0 0.0
    %792 = vmatpush1.msra.mxu0 0.0
    %793 = vmatprep.subr.mxu0 0.0
    %794 = vmatpush1.msra.mxu0 0.0
    %795 = vmatprep.subr.mxu0 0.0
    %796 = vmatpush1.msra.mxu0 0.0
    %797 = vmatprep.subr.mxu0 0.0
    %798 = vmatpush1.msra.mxu0 0.0
    %799 = vmatprep.subr.mxu0 0.0
    %800 = vmatpush1.msra.mxu0 0.0
    %801 = vmatprep.subr.mxu0 0.0
    %802 = vmatpush1.msra.mxu0 0.0
    %803 = vmatprep.subr.mxu0 0.0
    %804 = vmatpush1.msra.mxu0 0.0
    %805 = vmatprep.subr.mxu0 0.0
    %806 = vmatpush1.msra.mxu0 0.0
    %807 = vmatprep.mubr.f32.mxu0 0.0
    %808 = vmatmul.mubr.f32.gmra.mrb[0].mxu0 %v741
    %v809 = vpop.f32.mrb[0].mxu0
    %v810 = vadd.f32 0.0, %v809
    %v811 = vpop.f32.mrb[0].mxu0
    %812 = vdwg.mxu0
    %v814 = vsel %vm221, %v739, 0
    %816 = vmatprep.subr.mxu0 0.0
    %817 = vmatpush1.msra.mxu0 %v216
    %818 = vmatprep.subr.mxu0 0.0
    %819 = vmatpush1.msra.mxu0 %v217
    %820 = vmatprep.subr.mxu0 0.0
    %821 = vmatpush1.msra.mxu0 %v218
    %822 = vmatprep.subr.mxu0 0.0
    %823 = vmatpush1.msra.mxu0 %v219
    %824 = vmatprep.subr.mxu0 0.0
    %825 = vmatpush1.msra.mxu0 0.0
    %826 = vmatprep.subr.mxu0 0.0
    %827 = vmatpush1.msra.mxu0 0.0
    %828 = vmatprep.subr.mxu0 0.0
    %829 = vmatpush1.msra.mxu0 0.0
    %830 = vmatprep.subr.mxu0 0.0
    %831 = vmatpush1.msra.mxu0 0.0
    %832 = vmatprep.subr.mxu0 0.0
    %833 = vmatpush1.msra.mxu0 0.0
    %834 = vmatprep.subr.mxu0 0.0
    %835 = vmatpush1.msra.mxu0 0.0
    %836 = vmatprep.subr.mxu0 0.0
    %837 = vmatpush1.msra.mxu0 0.0
    %838 = vmatprep.subr.mxu0 0.0
    %839 = vmatpush1.msra.mxu0 0.0
    %840 = vmatprep.subr.mxu0 0.0
    %841 = vmatpush1.msra.mxu0 0.0
    %842 = vmatprep.subr.mxu0 0.0
    %843 = vmatpush1.msra.mxu0 0.0
    %844 = vmatprep.subr.mxu0 0.0
    %845 = vmatpush1.msra.mxu0 0.0
    %846 = vmatprep.subr.mxu0 0.0
    %847 = vmatpush1.msra.mxu0 0.0
    %848 = vmatprep.subr.mxu0 0.0
    %849 = vmatpush1.msra.mxu0 0.0
    %850 = vmatprep.subr.mxu0 0.0
    %851 = vmatpush1.msra.mxu0 0.0
    %852 = vmatprep.subr.mxu0 0.0
    %853 = vmatpush1.msra.mxu0 0.0
    %854 = vmatprep.subr.mxu0 0.0
    %855 = vmatpush1.msra.mxu0 0.0
    %856 = vmatprep.subr.mxu0 0.0
    %857 = vmatpush1.msra.mxu0 0.0
    %858 = vmatprep.subr.mxu0 0.0
    %859 = vmatpush1.msra.mxu0 0.0
    %860 = vmatprep.subr.mxu0 0.0
    %861 = vmatpush1.msra.mxu0 0.0
    %862 = vmatprep.subr.mxu0 0.0
    %863 = vmatpush1.msra.mxu0 0.0
    %864 = vmatprep.subr.mxu0 0.0
    %865 = vmatpush1.msra.mxu0 0.0
    %866 = vmatprep.subr.mxu0 0.0
    %867 = vmatpush1.msra.mxu0 0.0
    %868 = vmatprep.subr.mxu0 0.0
    %869 = vmatpush1.msra.mxu0 0.0
    %870 = vmatprep.subr.mxu0 0.0
    %871 = vmatpush1.msra.mxu0 0.0
    %872 = vmatprep.subr.mxu0 0.0
    %873 = vmatpush1.msra.mxu0 0.0
    %874 = vmatprep.subr.mxu0 0.0
    %875 = vmatpush1.msra.mxu0 0.0
    %876 = vmatprep.subr.mxu0 0.0
    %877 = vmatpush1.msra.mxu0 0.0
    %878 = vmatprep.subr.mxu0 0.0
    %879 = vmatpush1.msra.mxu0 0.0
    %880 = vmatprep.mubr.f32.mxu0 0.0
    %881 = vmatmul.mubr.f32.gmra.mrb[0].mxu0 %v814
    %v882 = vpop.f32.mrb[0].mxu0
    %v883 = vadd.f32 %v371, %v882
    %v884 = vpop.f32.mrb[0].mxu0
    %885 = vdwg.mxu0
    %v886 = vadd.f32 %v883, %v810
    %v887 = vmax.f32 %v886, 0.0
    %888 = vmatprep.subr.mxu0 0.0
    %889 = vmatpush1.msra.mxu0 %v208
    %890 = vmatprep.subr.mxu0 0.0
    %891 = vmatpush1.msra.mxu0 %v209
    %892 = vmatprep.subr.mxu0 0.0
    %893 = vmatpush1.msra.mxu0 %v210
    %894 = vmatprep.subr.mxu0 0.0
    %895 = vmatpush1.msra.mxu0 %v211
    %896 = vmatprep.subr.mxu0 0.0
    %897 = vmatpush1.msra.mxu0 0.0
    %898 = vmatprep.subr.mxu0 0.0
    %899 = vmatpush1.msra.mxu0 0.0
    %900 = vmatprep.subr.mxu0 0.0
    %901 = vmatpush1.msra.mxu0 0.0
    %902 = vmatprep.subr.mxu0 0.0
    %903 = vmatpush1.msra.mxu0 0.0
    %904 = vmatprep.subr.mxu0 0.0
    %905 = vmatpush1.msra.mxu0 0.0
    %906 = vmatprep.subr.mxu0 0.0
    %907 = vmatpush1.msra.mxu0 0.0
    %908 = vmatprep.subr.mxu0 0.0
    %909 = vmatpush1.msra.mxu0 0.0
    %910 = vmatprep.subr.mxu0 0.0
    %911 = vmatpush1.msra.mxu0 0.0
    %912 = vmatprep.subr.mxu0 0.0
    %913 = vmatpush1.msra.mxu0 0.0
    %914 = vmatprep.subr.mxu0 0.0
    %915 = vmatpush1.msra.mxu0 0.0
    %916 = vmatprep.subr.mxu0 0.0
    %917 = vmatpush1.msra.mxu0 0.0
    %918 = vmatprep.subr.mxu0 0.0
    %919 = vmatpush1.msra.mxu0 0.0
    %920 = vmatprep.subr.mxu0 0.0
    %921 = vmatpush1.msra.mxu0 0.0
    %922 = vmatprep.subr.mxu0 0.0
    %923 = vmatpush1.msra.mxu0 0.0
    %924 = vmatprep.subr.mxu0 0.0
    %925 = vmatpush1.msra.mxu0 0.0
    %926 = vmatprep.subr.mxu0 0.0
    %927 = vmatpush1.msra.mxu0 0.0
    %928 = vmatprep.subr.mxu0 0.0
    %929 = vmatpush1.msra.mxu0 0.0
    %930 = vmatprep.subr.mxu0 0.0
    %931 = vmatpush1.msra.mxu0 0.0
    %932 = vmatprep.subr.mxu0 0.0
    %933 = vmatpush1.msra.mxu0 0.0
    %934 = vmatprep.subr.mxu0 0.0
    %935 = vmatpush1.msra.mxu0 0.0
    %936 = vmatprep.subr.mxu0 0.0
    %937 = vmatpush1.msra.mxu0 0.0
    %938 = vmatprep.subr.mxu0 0.0
    %939 = vmatpush1.msra.mxu0 0.0
    %940 = vmatprep.subr.mxu0 0.0
    %941 = vmatpush1.msra.mxu0 0.0
    %942 = vmatprep.subr.mxu0 0.0
    %943 = vmatpush1.msra.mxu0 0.0
    %944 = vmatprep.subr.mxu0 0.0
    %945 = vmatpush1.msra.mxu0 0.0
    %946 = vmatprep.subr.mxu0 0.0
    %947 = vmatpush1.msra.mxu0 0.0
    %948 = vmatprep.subr.mxu0 0.0
    %949 = vmatpush1.msra.mxu0 0.0
    %950 = vmatprep.subr.mxu0 0.0
    %951 = vmatpush1.msra.mxu0 0.0
    %952 = vmatprep.mubr.f32.mxu0 0.0
    %953 = vmatmul.mubr.f32.gmra.mrb[0].mxu0 %v814
    %v954 = vpop.f32.mrb[0].mxu0
    %v955 = vadd.f32 0.0, %v954
    %v956 = vpop.f32.mrb[0].mxu0
    %957 = vdwg.mxu0
    %v958 = vadd.f32 %v185, %v955
    %v959 = vmax.f32 %v958, 0.0
    %v961 = vsel %vm221, %v887, 0
    %963 = vmatprep.subr.mxu0 0.0
    %964 = vmatpush1.msra.mxu0 %v212
    %965 = vmatprep.subr.mxu0 0.0
    %966 = vmatpush1.msra.mxu0 %v213
    %967 = vmatprep.subr.mxu0 0.0
    %968 = vmatpush1.msra.mxu0 %v214
    %969 = vmatprep.subr.mxu0 0.0
    %970 = vmatpush1.msra.mxu0 %v215
    %971 = vmatprep.subr.mxu0 0.0
    %972 = vmatpush1.msra.mxu0 0.0
    %973 = vmatprep.subr.mxu0 0.0
    %974 = vmatpush1.msra.mxu0 0.0
    %975 = vmatprep.subr.mxu0 0.0
    %976 = vmatpush1.msra.mxu0 0.0
    %977 = vmatprep.subr.mxu0 0.0
    %978 = vmatpush1.msra.mxu0 0.0
    %979 = vmatprep.subr.mxu0 0.0
    %980 = vmatpush1.msra.mxu0 0.0
    %981 = vmatprep.subr.mxu0 0.0
    %982 = vmatpush1.msra.mxu0 0.0
    %983 = vmatprep.subr.mxu0 0.0
    %984 = vmatpush1.msra.mxu0 0.0
    %985 = vmatprep.subr.mxu0 0.0
    %986 = vmatpush1.msra.mxu0 0.0
    %987 = vmatprep.subr.mxu0 0.0
    %988 = vmatpush1.msra.mxu0 0.0
    %989 = vmatprep.subr.mxu0 0.0
    %990 = vmatpush1.msra.mxu0 0.0
    %991 = vmatprep.subr.mxu0 0.0
    %992 = vmatpush1.msra.mxu0 0.0
    %993 = vmatprep.subr.mxu0 0.0
    %994 = vmatpush1.msra.mxu0 0.0
    %995 = vmatprep.subr.mxu0 0.0
    %996 = vmatpush1.msra.mxu0 0.0
    %997 = vmatprep.subr.mxu0 0.0
    %998 = vmatpush1.msra.mxu0 0.0
    %999 = vmatprep.subr.mxu0 0.0
    %1000 = vmatpush1.msra.mxu0 0.0
    %1001 = vmatprep.subr.mxu0 0.0
    %1002 = vmatpush1.msra.mxu0 0.0
    %1003 = vmatprep.subr.mxu0 0.0
    %1004 = vmatpush1.msra.mxu0 0.0
    %1005 = vmatprep.subr.mxu0 0.0
    %1006 = vmatpush1.msra.mxu0 0.0
    %1007 = vmatprep.subr.mxu0 0.0
    %1008 = vmatpush1.msra.mxu0 0.0
    %1009 = vmatprep.subr.mxu0 0.0
    %1010 = vmatpush1.msra.mxu0 0.0
    %1011 = vmatprep.subr.mxu0 0.0
    %1012 = vmatpush1.msra.mxu0 0.0
    %1013 = vmatprep.subr.mxu0 0.0
    %1014 = vmatpush1.msra.mxu0 0.0
    %1015 = vmatprep.subr.mxu0 0.0
    %1016 = vmatpush1.msra.mxu0 0.0
    %1017 = vmatprep.subr.mxu0 0.0
    %1018 = vmatpush1.msra.mxu0 0.0
    %1019 = vmatprep.subr.mxu0 0.0
    %1020 = vmatpush1.msra.mxu0 0.0
    %1021 = vmatprep.subr.mxu0 0.0
    %1022 = vmatpush1.msra.mxu0 0.0
    %1023 = vmatprep.subr.mxu0 0.0
    %1024 = vmatpush1.msra.mxu0 0.0
    %1025 = vmatprep.subr.mxu0 0.0
    %1026 = vmatpush1.msra.mxu0 0.0
    %1027 = vmatprep.mubr.f32.mxu0 0.0
    %1028 = vmatmul.mubr.f32.gmra.mrb[0].mxu0 %v961
    %v1029 = vpop.f32.mrb[0].mxu0
    %v1030 = vadd.f32 0.0, %v1029
    %v1031 = vpop.f32.mrb[0].mxu0
    %1032 = vdwg.mxu0
    %v1034 = vsel %vm221, %v959, 0
    %1036 = vmatprep.subr.mxu0 0.0
    %1037 = vmatpush1.msra.mxu0 %v216
    %1038 = vmatprep.subr.mxu0 0.0
    %1039 = vmatpush1.msra.mxu0 %v217
    %1040 = vmatprep.subr.mxu0 0.0
    %1041 = vmatpush1.msra.mxu0 %v218
    %1042 = vmatprep.subr.mxu0 0.0
    %1043 = vmatpush1.msra.mxu0 %v219
    %1044 = vmatprep.subr.mxu0 0.0
    %1045 = vmatpush1.msra.mxu0 0.0
    %1046 = vmatprep.subr.mxu0 0.0
    %1047 = vmatpush1.msra.mxu0 0.0
    %1048 = vmatprep.subr.mxu0 0.0
    %1049 = vmatpush1.msra.mxu0 0.0
    %1050 = vmatprep.subr.mxu0 0.0
    %1051 = vmatpush1.msra.mxu0 0.0
    %1052 = vmatprep.subr.mxu0 0.0
    %1053 = vmatpush1.msra.mxu0 0.0
    %1054 = vmatprep.subr.mxu0 0.0
    %1055 = vmatpush1.msra.mxu0 0.0
    %1056 = vmatprep.subr.mxu0 0.0
    %1057 = vmatpush1.msra.mxu0 0.0
    %1058 = vmatprep.subr.mxu0 0.0
    %1059 = vmatpush1.msra.mxu0 0.0
    %1060 = vmatprep.subr.mxu0 0.0
    %1061 = vmatpush1.msra.mxu0 0.0
    %1062 = vmatprep.subr.mxu0 0.0
    %1063 = vmatpush1.msra.mxu0 0.0
    %1064 = vmatprep.subr.mxu0 0.0
    %1065 = vmatpush1.msra.mxu0 0.0
    %1066 = vmatprep.subr.mxu0 0.0
    %1067 = vmatpush1.msra.mxu0 0.0
    %1068 = vmatprep.subr.mxu0 0.0
    %1069 = vmatpush1.msra.mxu0 0.0
    %1070 = vmatprep.subr.mxu0 0.0
    %1071 = vmatpush1.msra.mxu0 0.0
    %1072 = vmatprep.subr.mxu0 0.0
    %1073 = vmatpush1.msra.mxu0 0.0
    %1074 = vmatprep.subr.mxu0 0.0
    %1075 = vmatpush1.msra.mxu0 0.0
    %1076 = vmatprep.subr.mxu0 0.0
    %1077 = vmatpush1.msra.mxu0 0.0
    %1078 = vmatprep.subr.mxu0 0.0
    %1079 = vmatpush1.msra.mxu0 0.0
    %1080 = vmatprep.subr.mxu0 0.0
    %1081 = vmatpush1.msra.mxu0 0.0
    %1082 = vmatprep.subr.mxu0 0.0
    %1083 = vmatpush1.msra.mxu0 0.0
    %1084 = vmatprep.subr.mxu0 0.0
    %1085 = vmatpush1.msra.mxu0 0.0
    %1086 = vmatprep.subr.mxu0 0.0
    %1087 = vmatpush1.msra.mxu0 0.0
    %1088 = vmatprep.subr.mxu0 0.0
    %1089 = vmatpush1.msra.mxu0 0.0
    %1090 = vmatprep.subr.mxu0 0.0
    %1091 = vmatpush1.msra.mxu0 0.0
    %1092 = vmatprep.subr.mxu0 0.0
    %1093 = vmatpush1.msra.mxu0 0.0
    %1094 = vmatprep.subr.mxu0 0.0
    %1095 = vmatpush1.msra.mxu0 0.0
    %1096 = vmatprep.subr.mxu0 0.0
    %1097 = vmatpush1.msra.mxu0 0.0
    %1098 = vmatprep.subr.mxu0 0.0
    %1099 = vmatpush1.msra.mxu0 0.0
    %1100 = vmatprep.mubr.f32.mxu0 0.0
    %1101 = vmatmul.mubr.f32.gmra.mrb[0].mxu0 %v1034
    %v1102 = vpop.f32.mrb[0].mxu0
    %v1103 = vadd.f32 %v371, %v1102
    %v1104 = vpop.f32.mrb[0].mxu0
    %1105 = vdwg.mxu0
    %v1106 = vadd.f32 %v1103, %v1030
    %v1107 = vmax.f32 %v1106, 0.0
    %1108 = vmatprep.subr.mxu0 0.0
    %1109 = vmatpush1.msra.mxu0 %v208
    %1110 = vmatprep.subr.mxu0 0.0
    %1111 = vmatpush1.msra.mxu0 %v209
    %1112 = vmatprep.subr.mxu0 0.0
    %1113 = vmatpush1.msra.mxu0 %v210
    %1114 = vmatprep.subr.mxu0 0.0
    %1115 = vmatpush1.msra.mxu0 %v211
    %1116 = vmatprep.subr.mxu0 0.0
    %1117 = vmatpush1.msra.mxu0 0.0
    %1118 = vmatprep.subr.mxu0 0.0
    %1119 = vmatpush1.msra.mxu0 0.0
    %1120 = vmatprep.subr.mxu0 0.0
    %1121 = vmatpush1.msra.mxu0 0.0
    %1122 = vmatprep.subr.mxu0 0.0
    %1123 = vmatpush1.msra.mxu0 0.0
    %1124 = vmatprep.subr.mxu0 0.0
    %1125 = vmatpush1.msra.mxu0 0.0
    %1126 = vmatprep.subr.mxu0 0.0
    %1127 = vmatpush1.msra.mxu0 0.0
    %1128 = vmatprep.subr.mxu0 0.0
    %1129 = vmatpush1.msra.mxu0 0.0
    %1130 = vmatprep.subr.mxu0 0.0
    %1131 = vmatpush1.msra.mxu0 0.0
    %1132 = vmatprep.subr.mxu0 0.0
    %1133 = vmatpush1.msra.mxu0 0.0
    %1134 = vmatprep.subr.mxu0 0.0
    %1135 = vmatpush1.msra.mxu0 0.0
    %1136 = vmatprep.subr.mxu0 0.0
    %1137 = vmatpush1.msra.mxu0 0.0
    %1138 = vmatprep.subr.mxu0 0.0
    %1139 = vmatpush1.msra.mxu0 0.0
    %1140 = vmatprep.subr.mxu0 0.0
    %1141 = vmatpush1.msra.mxu0 0.0
    %1142 = vmatprep.subr.mxu0 0.0
    %1143 = vmatpush1.msra.mxu0 0.0
    %1144 = vmatprep.subr.mxu0 0.0
    %1145 = vmatpush1.msra.mxu0 0.0
    %1146 = vmatprep.subr.mxu0 0.0
    %1147 = vmatpush1.msra.mxu0 0.0
    %1148 = vmatprep.subr.mxu0 0.0
    %1149 = vmatpush1.msra.mxu0 0.0
    %1150 = vmatprep.subr.mxu0 0.0
    %1151 = vmatpush1.msra.mxu0 0.0
    %1152 = vmatprep.subr.mxu0 0.0
    %1153 = vmatpush1.msra.mxu0 0.0
    %1154 = vmatprep.subr.mxu0 0.0
    %1155 = vmatpush1.msra.mxu0 0.0
    %1156 = vmatprep.subr.mxu0 0.0
    %1157 = vmatpush1.msra.mxu0 0.0
    %1158 = vmatprep.subr.mxu0 0.0
    %1159 = vmatpush1.msra.mxu0 0.0
    %1160 = vmatprep.subr.mxu0 0.0
    %1161 = vmatpush1.msra.mxu0 0.0
    %1162 = vmatprep.subr.mxu0 0.0
    %1163 = vmatpush1.msra.mxu0 0.0
    %1164 = vmatprep.subr.mxu0 0.0
    %1165 = vmatpush1.msra.mxu0 0.0
    %1166 = vmatprep.subr.mxu0 0.0
    %1167 = vmatpush1.msra.mxu0 0.0
    %1168 = vmatprep.subr.mxu0 0.0
    %1169 = vmatpush1.msra.mxu0 0.0
    %1170 = vmatprep.subr.mxu0 0.0
    %1171 = vmatpush1.msra.mxu0 0.0
    %1172 = vmatprep.mubr.f32.mxu0 0.0
    %1173 = vmatmul.mubr.f32.gmra.mrb[0].mxu0 %v1034
    %v1174 = vpop.f32.mrb[0].mxu0
    %v1175 = vadd.f32 0.0, %v1174
    %v1176 = vpop.f32.mrb[0].mxu0
    %1177 = vdwg.mxu0
    %v1178 = vadd.f32 %v190, %v1175
    %v1179 = vmax.f32 %v1178, 0.0
    %v1181 = vsel %vm221, %v1107, 0
    %1183 = vmatprep.subr.mxu0 0.0
    %1184 = vmatpush1.msra.mxu0 %v212
    %1185 = vmatprep.subr.mxu0 0.0
    %1186 = vmatpush1.msra.mxu0 %v213
    %1187 = vmatprep.subr.mxu0 0.0
    %1188 = vmatpush1.msra.mxu0 %v214
    %1189 = vmatprep.subr.mxu0 0.0
    %1190 = vmatpush1.msra.mxu0 %v215
    %1191 = vmatprep.subr.mxu0 0.0
    %1192 = vmatpush1.msra.mxu0 0.0
    %1193 = vmatprep.subr.mxu0 0.0
    %1194 = vmatpush1.msra.mxu0 0.0
    %1195 = vmatprep.subr.mxu0 0.0
    %1196 = vmatpush1.msra.mxu0 0.0
    %1197 = vmatprep.subr.mxu0 0.0
    %1198 = vmatpush1.msra.mxu0 0.0
    %1199 = vmatprep.subr.mxu0 0.0
    %1200 = vmatpush1.msra.mxu0 0.0
    %1201 = vmatprep.subr.mxu0 0.0
    %1202 = vmatpush1.msra.mxu0 0.0
    %1203 = vmatprep.subr.mxu0 0.0
    %1204 = vmatpush1.msra.mxu0 0.0
    %1205 = vmatprep.subr.mxu0 0.0
    %1206 = vmatpush1.msra.mxu0 0.0
    %1207 = vmatprep.subr.mxu0 0.0
    %1208 = vmatpush1.msra.mxu0 0.0
    %1209 = vmatprep.subr.mxu0 0.0
    %1210 = vmatpush1.msra.mxu0 0.0
    %1211 = vmatprep.subr.mxu0 0.0
    %1212 = vmatpush1.msra.mxu0 0.0
    %1213 = vmatprep.subr.mxu0 0.0
    %1214 = vmatpush1.msra.mxu0 0.0
    %1215 = vmatprep.subr.mxu0 0.0
    %1216 = vmatpush1.msra.mxu0 0.0
    %1217 = vmatprep.subr.mxu0 0.0
    %1218 = vmatpush1.msra.mxu0 0.0
    %1219 = vmatprep.subr.mxu0 0.0
    %1220 = vmatpush1.msra.mxu0 0.0
    %1221 = vmatprep.subr.mxu0 0.0
    %1222 = vmatpush1.msra.mxu0 0.0
    %1223 = vmatprep.subr.mxu0 0.0
    %1224 = vmatpush1.msra.mxu0 0.0
    %1225 = vmatprep.subr.mxu0 0.0
    %1226 = vmatpush1.msra.mxu0 0.0
    %1227 = vmatprep.subr.mxu0 0.0
    %1228 = vmatpush1.msra.mxu0 0.0
    %1229 = vmatprep.subr.mxu0 0.0
    %1230 = vmatpush1.msra.mxu0 0.0
    %1231 = vmatprep.subr.mxu0 0.0
    %1232 = vmatpush1.msra.mxu0 0.0
    %1233 = vmatprep.subr.mxu0 0.0
    %1234 = vmatpush1.msra.mxu0 0.0
    %1235 = vmatprep.subr.mxu0 0.0
    %1236 = vmatpush1.msra.mxu0 0.0
    %1237 = vmatprep.subr.mxu0 0.0
    %1238 = vmatpush1.msra.mxu0 0.0
    %1239 = vmatprep.subr.mxu0 0.0
    %1240 = vmatpush1.msra.mxu0 0.0
    %1241 = vmatprep.subr.mxu0 0.0
    %1242 = vmatpush1.msra.mxu0 0.0
    %1243 = vmatprep.subr.mxu0 0.0
    %1244 = vmatpush1.msra.mxu0 0.0
    %1245 = vmatprep.subr.mxu0 0.0
    %1246 = vmatpush1.msra.mxu0 0.0
    %1247 = vmatprep.mubr.f32.mxu0 0.0
    %1248 = vmatmul.mubr.f32.gmra.mrb[0].mxu0 %v1181
    %v1249 = vpop.f32.mrb[0].mxu0
    %v1250 = vadd.f32 0.0, %v1249
    %v1251 = vpop.f32.mrb[0].mxu0
    %1252 = vdwg.mxu0
    %v1254 = vsel %vm221, %v1179, 0
    %1256 = vmatprep.subr.mxu0 0.0
    %1257 = vmatpush1.msra.mxu0 %v216
    %1258 = vmatprep.subr.mxu0 0.0
    %1259 = vmatpush1.msra.mxu0 %v217
    %1260 = vmatprep.subr.mxu0 0.0
    %1261 = vmatpush1.msra.mxu0 %v218
    %1262 = vmatprep.subr.mxu0 0.0
    %1263 = vmatpush1.msra.mxu0 %v219
    %1264 = vmatprep.subr.mxu0 0.0
    %1265 = vmatpush1.msra.mxu0 0.0
    %1266 = vmatprep.subr.mxu0 0.0
    %1267 = vmatpush1.msra.mxu0 0.0
    %1268 = vmatprep.subr.mxu0 0.0
    %1269 = vmatpush1.msra.mxu0 0.0
    %1270 = vmatprep.subr.mxu0 0.0
    %1271 = vmatpush1.msra.mxu0 0.0
    %1272 = vmatprep.subr.mxu0 0.0
    %1273 = vmatpush1.msra.mxu0 0.0
    %1274 = vmatprep.subr.mxu0 0.0
    %1275 = vmatpush1.msra.mxu0 0.0
    %1276 = vmatprep.subr.mxu0 0.0
    %1277 = vmatpush1.msra.mxu0 0.0
    %1278 = vmatprep.subr.mxu0 0.0
    %1279 = vmatpush1.msra.mxu0 0.0
    %1280 = vmatprep.subr.mxu0 0.0
    %1281 = vmatpush1.msra.mxu0 0.0
    %1282 = vmatprep.subr.mxu0 0.0
    %1283 = vmatpush1.msra.mxu0 0.0
    %1284 = vmatprep.subr.mxu0 0.0
    %1285 = vmatpush1.msra.mxu0 0.0
    %1286 = vmatprep.subr.mxu0 0.0
    %1287 = vmatpush1.msra.mxu0 0.0
    %1288 = vmatprep.subr.mxu0 0.0
    %1289 = vmatpush1.msra.mxu0 0.0
    %1290 = vmatprep.subr.mxu0 0.0
    %1291 = vmatpush1.msra.mxu0 0.0
    %1292 = vmatprep.subr.mxu0 0.0
    %1293 = vmatpush1.msra.mxu0 0.0
    %1294 = vmatprep.subr.mxu0 0.0
    %1295 = vmatpush1.msra.mxu0 0.0
    %1296 = vmatprep.subr.mxu0 0.0
    %1297 = vmatpush1.msra.mxu0 0.0
    %1298 = vmatprep.subr.mxu0 0.0
    %1299 = vmatpush1.msra.mxu0 0.0
    %1300 = vmatprep.subr.mxu0 0.0
    %1301 = vmatpush1.msra.mxu0 0.0
    %1302 = vmatprep.subr.mxu0 0.0
    %1303 = vmatpush1.msra.mxu0 0.0
    %1304 = vmatprep.subr.mxu0 0.0
    %1305 = vmatpush1.msra.mxu0 0.0
    %1306 = vmatprep.subr.mxu0 0.0
    %1307 = vmatpush1.msra.mxu0 0.0
    %1308 = vmatprep.subr.mxu0 0.0
    %1309 = vmatpush1.msra.mxu0 0.0
    %1310 = vmatprep.subr.mxu0 0.0
    %1311 = vmatpush1.msra.mxu0 0.0
    %1312 = vmatprep.subr.mxu0 0.0
    %1313 = vmatpush1.msra.mxu0 0.0
    %1314 = vmatprep.subr.mxu0 0.0
    %1315 = vmatpush1.msra.mxu0 0.0
    %1316 = vmatprep.subr.mxu0 0.0
    %1317 = vmatpush1.msra.mxu0 0.0
    %1318 = vmatprep.subr.mxu0 0.0
    %1319 = vmatpush1.msra.mxu0 0.0
    %1320 = vmatprep.mubr.f32.mxu0 0.0
    %1321 = vmatmul.mubr.f32.gmra.mrb[0].mxu0 %v1254
    %v1322 = vpop.f32.mrb[0].mxu0
    %v1323 = vadd.f32 %v371, %v1322
    %v1324 = vpop.f32.mrb[0].mxu0
    %1325 = vdwg.mxu0
    %v1326 = vadd.f32 %v1323, %v1250
    %v1327 = vmax.f32 %v1326, 0.0
    %1328 = vmatprep.subr.mxu0 0.0
    %1329 = vmatpush1.msra.mxu0 %v208
    %1330 = vmatprep.subr.mxu0 0.0
    %1331 = vmatpush1.msra.mxu0 %v209
    %1332 = vmatprep.subr.mxu0 0.0
    %1333 = vmatpush1.msra.mxu0 %v210
    %1334 = vmatprep.subr.mxu0 0.0
    %1335 = vmatpush1.msra.mxu0 %v211
    %1336 = vmatprep.subr.mxu0 0.0
    %1337 = vmatpush1.msra.mxu0 0.0
    %1338 = vmatprep.subr.mxu0 0.0
    %1339 = vmatpush1.msra.mxu0 0.0
    %1340 = vmatprep.subr.mxu0 0.0
    %1341 = vmatpush1.msra.mxu0 0.0
    %1342 = vmatprep.subr.mxu0 0.0
    %1343 = vmatpush1.msra.mxu0 0.0
    %1344 = vmatprep.subr.mxu0 0.0
    %1345 = vmatpush1.msra.mxu0 0.0
    %1346 = vmatprep.subr.mxu0 0.0
    %1347 = vmatpush1.msra.mxu0 0.0
    %1348 = vmatprep.subr.mxu0 0.0
    %1349 = vmatpush1.msra.mxu0 0.0
    %1350 = vmatprep.subr.mxu0 0.0
    %1351 = vmatpush1.msra.mxu0 0.0
    %1352 = vmatprep.subr.mxu0 0.0
    %1353 = vmatpush1.msra.mxu0 0.0
    %1354 = vmatprep.subr.mxu0 0.0
    %1355 = vmatpush1.msra.mxu0 0.0
    %1356 = vmatprep.subr.mxu0 0.0
    %1357 = vmatpush1.msra.mxu0 0.0
    %1358 = vmatprep.subr.mxu0 0.0
    %1359 = vmatpush1.msra.mxu0 0.0
    %1360 = vmatprep.subr.mxu0 0.0
    %1361 = vmatpush1.msra.mxu0 0.0
    %1362 = vmatprep.subr.mxu0 0.0
    %1363 = vmatpush1.msra.mxu0 0.0
    %1364 = vmatprep.subr.mxu0 0.0
    %1365 = vmatpush1.msra.mxu0 0.0
    %1366 = vmatprep.subr.mxu0 0.0
    %1367 = vmatpush1.msra.mxu0 0.0
    %1368 = vmatprep.subr.mxu0 0.0
    %1369 = vmatpush1.msra.mxu0 0.0
    %1370 = vmatprep.subr.mxu0 0.0
    %1371 = vmatpush1.msra.mxu0 0.0
    %1372 = vmatprep.subr.mxu0 0.0
    %1373 = vmatpush1.msra.mxu0 0.0
    %1374 = vmatprep.subr.mxu0 0.0
    %1375 = vmatpush1.msra.mxu0 0.0
    %1376 = vmatprep.subr.mxu0 0.0
    %1377 = vmatpush1.msra.mxu0 0.0
    %1378 = vmatprep.subr.mxu0 0.0
    %1379 = vmatpush1.msra.mxu0 0.0
    %1380 = vmatprep.subr.mxu0 0.0
    %1381 = vmatpush1.msra.mxu0 0.0
    %1382 = vmatprep.subr.mxu0 0.0
    %1383 = vmatpush1.msra.mxu0 0.0
    %1384 = vmatprep.subr.mxu0 0.0
    %1385 = vmatpush1.msra.mxu0 0.0
    %1386 = vmatprep.subr.mxu0 0.0
    %1387 = vmatpush1.msra.mxu0 0.0
    %1388 = vmatprep.subr.mxu0 0.0
    %1389 = vmatpush1.msra.mxu0 0.0
    %1390 = vmatprep.subr.mxu0 0.0
    %1391 = vmatpush1.msra.mxu0 0.0
    %1392 = vmatprep.mubr.f32.mxu0 0.0
    %1393 = vmatmul.mubr.f32.gmra.mrb[0].mxu0 %v1254
    %v1394 = vpop.f32.mrb[0].mxu0
    %v1395 = vadd.f32 0.0, %v1394
    %v1396 = vpop.f32.mrb[0].mxu0
    %1397 = vdwg.mxu0
    %v1398 = vadd.f32 %v195, %v1395
    %v1399 = vmax.f32 %v1398, 0.0
    %v1401 = vsel %vm221, %v1327, 0
    %1403 = vmatprep.subr.mxu0 0.0
    %1404 = vmatpush1.msra.mxu0 %v212
    %1405 = vmatprep.subr.mxu0 0.0
    %1406 = vmatpush1.msra.mxu0 %v213
    %1407 = vmatprep.subr.mxu0 0.0
    %1408 = vmatpush1.msra.mxu0 %v214
    %1409 = vmatprep.subr.mxu0 0.0
    %1410 = vmatpush1.msra.mxu0 %v215
    %1411 = vmatprep.subr.mxu0 0.0
    %1412 = vmatpush1.msra.mxu0 0.0
    %1413 = vmatprep.subr.mxu0 0.0
    %1414 = vmatpush1.msra.mxu0 0.0
    %1415 = vmatprep.subr.mxu0 0.0
    %1416 = vmatpush1.msra.mxu0 0.0
    %1417 = vmatprep.subr.mxu0 0.0
    %1418 = vmatpush1.msra.mxu0 0.0
    %1419 = vmatprep.subr.mxu0 0.0
    %1420 = vmatpush1.msra.mxu0 0.0
    %1421 = vmatprep.subr.mxu0 0.0
    %1422 = vmatpush1.msra.mxu0 0.0
    %1423 = vmatprep.subr.mxu0 0.0
    %1424 = vmatpush1.msra.mxu0 0.0
    %1425 = vmatprep.subr.mxu0 0.0
    %1426 = vmatpush1.msra.mxu0 0.0
    %1427 = vmatprep.subr.mxu0 0.0
    %1428 = vmatpush1.msra.mxu0 0.0
    %1429 = vmatprep.subr.mxu0 0.0
    %1430 = vmatpush1.msra.mxu0 0.0
    %1431 = vmatprep.subr.mxu0 0.0
    %1432 = vmatpush1.msra.mxu0 0.0
    %1433 = vmatprep.subr.mxu0 0.0
    %1434 = vmatpush1.msra.mxu0 0.0
    %1435 = vmatprep.subr.mxu0 0.0
    %1436 = vmatpush1.msra.mxu0 0.0
    %1437 = vmatprep.subr.mxu0 0.0
    %1438 = vmatpush1.msra.mxu0 0.0
    %1439 = vmatprep.subr.mxu0 0.0
    %1440 = vmatpush1.msra.mxu0 0.0
    %1441 = vmatprep.subr.mxu0 0.0
    %1442 = vmatpush1.msra.mxu0 0.0
    %1443 = vmatprep.subr.mxu0 0.0
    %1444 = vmatpush1.msra.mxu0 0.0
    %1445 = vmatprep.subr.mxu0 0.0
    %1446 = vmatpush1.msra.mxu0 0.0
    %1447 = vmatprep.subr.mxu0 0.0
    %1448 = vmatpush1.msra.mxu0 0.0
    %1449 = vmatprep.subr.mxu0 0.0
    %1450 = vmatpush1.msra.mxu0 0.0
    %1451 = vmatprep.subr.mxu0 0.0
    %1452 = vmatpush1.msra.mxu0 0.0
    %1453 = vmatprep.subr.mxu0 0.0
    %1454 = vmatpush1.msra.mxu0 0.0
    %1455 = vmatprep.subr.mxu0 0.0
    %1456 = vmatpush1.msra.mxu0 0.0
    %1457 = vmatprep.subr.mxu0 0.0
    %1458 = vmatpush1.msra.mxu0 0.0
    %1459 = vmatprep.subr.mxu0 0.0
    %1460 = vmatpush1.msra.mxu0 0.0
    %1461 = vmatprep.subr.mxu0 0.0
    %1462 = vmatpush1.msra.mxu0 0.0
    %1463 = vmatprep.subr.mxu0 0.0
    %1464 = vmatpush1.msra.mxu0 0.0
    %1465 = vmatprep.subr.mxu0 0.0
    %1466 = vmatpush1.msra.mxu0 0.0
    %1467 = vmatprep.mubr.f32.mxu0 0.0
    %1468 = vmatmul.mubr.f32.gmra.mrb[0].mxu0 %v1401
    %v1469 = vpop.f32.mrb[0].mxu0
    %v1470 = vadd.f32 0.0, %v1469
    %v1471 = vpop.f32.mrb[0].mxu0
    %1472 = vdwg.mxu0
    %v1474 = vsel %vm221, %v1399, 0
    %1476 = vmatprep.subr.mxu0 0.0
    %1477 = vmatpush1.msra.mxu0 %v216
    %1478 = vmatprep.subr.mxu0 0.0
    %1479 = vmatpush1.msra.mxu0 %v217
    %1480 = vmatprep.subr.mxu0 0.0
    %1481 = vmatpush1.msra.mxu0 %v218
    %1482 = vmatprep.subr.mxu0 0.0
    %1483 = vmatpush1.msra.mxu0 %v219
    %1484 = vmatprep.subr.mxu0 0.0
    %1485 = vmatpush1.msra.mxu0 0.0
    %1486 = vmatprep.subr.mxu0 0.0
    %1487 = vmatpush1.msra.mxu0 0.0
    %1488 = vmatprep.subr.mxu0 0.0
    %1489 = vmatpush1.msra.mxu0 0.0
    %1490 = vmatprep.subr.mxu0 0.0
    %1491 = vmatpush1.msra.mxu0 0.0
    %1492 = vmatprep.subr.mxu0 0.0
    %1493 = vmatpush1.msra.mxu0 0.0
    %1494 = vmatprep.subr.mxu0 0.0
    %1495 = vmatpush1.msra.mxu0 0.0
    %1496 = vmatprep.subr.mxu0 0.0
    %1497 = vmatpush1.msra.mxu0 0.0
    %1498 = vmatprep.subr.mxu0 0.0
    %1499 = vmatpush1.msra.mxu0 0.0
    %1500 = vmatprep.subr.mxu0 0.0
    %1501 = vmatpush1.msra.mxu0 0.0
    %1502 = vmatprep.subr.mxu0 0.0
    %1503 = vmatpush1.msra.mxu0 0.0
    %1504 = vmatprep.subr.mxu0 0.0
    %1505 = vmatpush1.msra.mxu0 0.0
    %1506 = vmatprep.subr.mxu0 0.0
    %1507 = vmatpush1.msra.mxu0 0.0
    %1508 = vmatprep.subr.mxu0 0.0
    %1509 = vmatpush1.msra.mxu0 0.0
    %1510 = vmatprep.subr.mxu0 0.0
    %1511 = vmatpush1.msra.mxu0 0.0
    %1512 = vmatprep.subr.mxu0 0.0
    %1513 = vmatpush1.msra.mxu0 0.0
    %1514 = vmatprep.subr.mxu0 0.0
    %1515 = vmatpush1.msra.mxu0 0.0
    %1516 = vmatprep.subr.mxu0 0.0
    %1517 = vmatpush1.msra.mxu0 0.0
    %1518 = vmatprep.subr.mxu0 0.0
    %1519 = vmatpush1.msra.mxu0 0.0
    %1520 = vmatprep.subr.mxu0 0.0
    %1521 = vmatpush1.msra.mxu0 0.0
    %1522 = vmatprep.subr.mxu0 0.0
    %1523 = vmatpush1.msra.mxu0 0.0
    %1524 = vmatprep.subr.mxu0 0.0
    %1525 = vmatpush1.msra.mxu0 0.0
    %1526 = vmatprep.subr.mxu0 0.0
    %1527 = vmatpush1.msra.mxu0 0.0
    %1528 = vmatprep.subr.mxu0 0.0
    %1529 = vmatpush1.msra.mxu0 0.0
    %1530 = vmatprep.subr.mxu0 0.0
    %1531 = vmatpush1.msra.mxu0 0.0
    %1532 = vmatprep.subr.mxu0 0.0
    %1533 = vmatpush1.msra.mxu0 0.0
    %1534 = vmatprep.subr.mxu0 0.0
    %1535 = vmatpush1.msra.mxu0 0.0
    %1536 = vmatprep.subr.mxu0 0.0
    %1537 = vmatpush1.msra.mxu0 0.0
    %1538 = vmatprep.subr.mxu0 0.0
    %1539 = vmatpush1.msra.mxu0 0.0
    %1540 = vmatprep.mubr.f32.mxu0 0.0
    %1541 = vmatmul.mubr.f32.gmra.mrb[0].mxu0 %v1474
    %v1542 = vpop.f32.mrb[0].mxu0
    %v1543 = vadd.f32 %v371, %v1542
    %v1544 = vpop.f32.mrb[0].mxu0
    %1545 = vdwg.mxu0
    %v1546 = vadd.f32 %v1543, %v1470
    %v1547 = vmax.f32 %v1546, 0.0
    %1548 = vmatprep.subr.mxu0 0.0
    %1549 = vmatpush1.msra.mxu0 %v208
    %1550 = vmatprep.subr.mxu0 0.0
    %1551 = vmatpush1.msra.mxu0 %v209
    %1552 = vmatprep.subr.mxu0 0.0
    %1553 = vmatpush1.msra.mxu0 %v210
    %1554 = vmatprep.subr.mxu0 0.0
    %1555 = vmatpush1.msra.mxu0 %v211
    %1556 = vmatprep.subr.mxu0 0.0
    %1557 = vmatpush1.msra.mxu0 0.0
    %1558 = vmatprep.subr.mxu0 0.0
    %1559 = vmatpush1.msra.mxu0 0.0
    %1560 = vmatprep.subr.mxu0 0.0
    %1561 = vmatpush1.msra.mxu0 0.0
    %1562 = vmatprep.subr.mxu0 0.0
    %1563 = vmatpush1.msra.mxu0 0.0
    %1564 = vmatprep.subr.mxu0 0.0
    %1565 = vmatpush1.msra.mxu0 0.0
    %1566 = vmatprep.subr.mxu0 0.0
    %1567 = vmatpush1.msra.mxu0 0.0
    %1568 = vmatprep.subr.mxu0 0.0
    %1569 = vmatpush1.msra.mxu0 0.0
    %1570 = vmatprep.subr.mxu0 0.0
    %1571 = vmatpush1.msra.mxu0 0.0
    %1572 = vmatprep.subr.mxu0 0.0
    %1573 = vmatpush1.msra.mxu0 0.0
    %1574 = vmatprep.subr.mxu0 0.0
    %1575 = vmatpush1.msra.mxu0 0.0
    %1576 = vmatprep.subr.mxu0 0.0
    %1577 = vmatpush1.msra.mxu0 0.0
    %1578 = vmatprep.subr.mxu0 0.0
    %1579 = vmatpush1.msra.mxu0 0.0
    %1580 = vmatprep.subr.mxu0 0.0
    %1581 = vmatpush1.msra.mxu0 0.0
    %1582 = vmatprep.subr.mxu0 0.0
    %1583 = vmatpush1.msra.mxu0 0.0
    %1584 = vmatprep.subr.mxu0 0.0
    %1585 = vmatpush1.msra.mxu0 0.0
    %1586 = vmatprep.subr.mxu0 0.0
    %1587 = vmatpush1.msra.mxu0 0.0
    %1588 = vmatprep.subr.mxu0 0.0
    %1589 = vmatpush1.msra.mxu0 0.0
    %1590 = vmatprep.subr.mxu0 0.0
    %1591 = vmatpush1.msra.mxu0 0.0
    %1592 = vmatprep.subr.mxu0 0.0
    %1593 = vmatpush1.msra.mxu0 0.0
    %1594 = vmatprep.subr.mxu0 0.0
    %1595 = vmatpush1.msra.mxu0 0.0
    %1596 = vmatprep.subr.mxu0 0.0
    %1597 = vmatpush1.msra.mxu0 0.0
    %1598 = vmatprep.subr.mxu0 0.0
    %1599 = vmatpush1.msra.mxu0 0.0
    %1600 = vmatprep.subr.mxu0 0.0
    %1601 = vmatpush1.msra.mxu0 0.0
    %1602 = vmatprep.subr.mxu0 0.0
    %1603 = vmatpush1.msra.mxu0 0.0
    %1604 = vmatprep.subr.mxu0 0.0
    %1605 = vmatpush1.msra.mxu0 0.0
    %1606 = vmatprep.subr.mxu0 0.0
    %1607 = vmatpush1.msra.mxu0 0.0
    %1608 = vmatprep.subr.mxu0 0.0
    %1609 = vmatpush1.msra.mxu0 0.0
    %1610 = vmatprep.subr.mxu0 0.0
    %1611 = vmatpush1.msra.mxu0 0.0
    %1612 = vmatprep.mubr.f32.mxu0 0.0
    %1613 = vmatmul.mubr.f32.gmra.mrb[0].mxu0 %v1474
    %v1614 = vpop.f32.mrb[0].mxu0
    %v1615 = vadd.f32 0.0, %v1614
    %v1616 = vpop.f32.mrb[0].mxu0
    %1617 = vdwg.mxu0
    %v1618 = vadd.f32 %v200, %v1615
    %v1619 = vmax.f32 %v1618, 0.0
    %v1621 = vsel %vm221, %v1547, 0
    %1623 = vmatprep.subr.mxu0 0.0
    %1624 = vmatpush1.msra.mxu0 %v212
    %1625 = vmatprep.subr.mxu0 0.0
    %1626 = vmatpush1.msra.mxu0 %v213
    %1627 = vmatprep.subr.mxu0 0.0
    %1628 = vmatpush1.msra.mxu0 %v214
    %1629 = vmatprep.subr.mxu0 0.0
    %1630 = vmatpush1.msra.mxu0 %v215
    %1631 = vmatprep.subr.mxu0 0.0
    %1632 = vmatpush1.msra.mxu0 0.0
    %1633 = vmatprep.subr.mxu0 0.0
    %1634 = vmatpush1.msra.mxu0 0.0
    %1635 = vmatprep.subr.mxu0 0.0
    %1636 = vmatpush1.msra.mxu0 0.0
    %1637 = vmatprep.subr.mxu0 0.0
    %1638 = vmatpush1.msra.mxu0 0.0
    %1639 = vmatprep.subr.mxu0 0.0
    %1640 = vmatpush1.msra.mxu0 0.0
    %1641 = vmatprep.subr.mxu0 0.0
    %1642 = vmatpush1.msra.mxu0 0.0
    %1643 = vmatprep.subr.mxu0 0.0
    %1644 = vmatpush1.msra.mxu0 0.0
    %1645 = vmatprep.subr.mxu0 0.0
    %1646 = vmatpush1.msra.mxu0 0.0
    %1647 = vmatprep.subr.mxu0 0.0
    %1648 = vmatpush1.msra.mxu0 0.0
    %1649 = vmatprep.subr.mxu0 0.0
    %1650 = vmatpush1.msra.mxu0 0.0
    %1651 = vmatprep.subr.mxu0 0.0
    %1652 = vmatpush1.msra.mxu0 0.0
    %1653 = vmatprep.subr.mxu0 0.0
    %1654 = vmatpush1.msra.mxu0 0.0
    %1655 = vmatprep.subr.mxu0 0.0
    %1656 = vmatpush1.msra.mxu0 0.0
    %1657 = vmatprep.subr.mxu0 0.0
    %1658 = vmatpush1.msra.mxu0 0.0
    %1659 = vmatprep.subr.mxu0 0.0
    %1660 = vmatpush1.msra.mxu0 0.0
    %1661 = vmatprep.subr.mxu0 0.0
    %1662 = vmatpush1.msra.mxu0 0.0
    %1663 = vmatprep.subr.mxu0 0.0
    %1664 = vmatpush1.msra.mxu0 0.0
    %1665 = vmatprep.subr.mxu0 0.0
    %1666 = vmatpush1.msra.mxu0 0.0
    %1667 = vmatprep.subr.mxu0 0.0
    %1668 = vmatpush1.msra.mxu0 0.0
    %1669 = vmatprep.subr.mxu0 0.0
    %1670 = vmatpush1.msra.mxu0 0.0
    %1671 = vmatprep.subr.mxu0 0.0
    %1672 = vmatpush1.msra.mxu0 0.0
    %1673 = vmatprep.subr.mxu0 0.0
    %1674 = vmatpush1.msra.mxu0 0.0
    %1675 = vmatprep.subr.mxu0 0.0
    %1676 = vmatpush1.msra.mxu0 0.0
    %1677 = vmatprep.subr.mxu0 0.0
    %1678 = vmatpush1.msra.mxu0 0.0
    %1679 = vmatprep.subr.mxu0 0.0
    %1680 = vmatpush1.msra.mxu0 0.0
    %1681 = vmatprep.subr.mxu0 0.0
    %1682 = vmatpush1.msra.mxu0 0.0
    %1683 = vmatprep.subr.mxu0 0.0
    %1684 = vmatpush1.msra.mxu0 0.0
    %1685 = vmatprep.subr.mxu0 0.0
    %1686 = vmatpush1.msra.mxu0 0.0
    %1687 = vmatprep.mubr.f32.mxu0 0.0
    %1688 = vmatmul.mubr.f32.gmra.mrb[0].mxu0 %v1621
    %v1689 = vpop.f32.mrb[0].mxu0
    %v1690 = vadd.f32 0.0, %v1689
    %v1691 = vpop.f32.mrb[0].mxu0
    %1692 = vdwg.mxu0
    %v1694 = vsel %vm221, %v1619, 0
    %1696 = vmatprep.subr.mxu0 0.0
    %1697 = vmatpush1.msra.mxu0 %v216
    %1698 = vmatprep.subr.mxu0 0.0
    %1699 = vmatpush1.msra.mxu0 %v217
    %1700 = vmatprep.subr.mxu0 0.0
    %1701 = vmatpush1.msra.mxu0 %v218
    %1702 = vmatprep.subr.mxu0 0.0
    %1703 = vmatpush1.msra.mxu0 %v219
    %1704 = vmatprep.subr.mxu0 0.0
    %1705 = vmatpush1.msra.mxu0 0.0
    %1706 = vmatprep.subr.mxu0 0.0
    %1707 = vmatpush1.msra.mxu0 0.0
    %1708 = vmatprep.subr.mxu0 0.0
    %1709 = vmatpush1.msra.mxu0 0.0
    %1710 = vmatprep.subr.mxu0 0.0
    %1711 = vmatpush1.msra.mxu0 0.0
    %1712 = vmatprep.subr.mxu0 0.0
    %1713 = vmatpush1.msra.mxu0 0.0
    %1714 = vmatprep.subr.mxu0 0.0
    %1715 = vmatpush1.msra.mxu0 0.0
    %1716 = vmatprep.subr.mxu0 0.0
    %1717 = vmatpush1.msra.mxu0 0.0
    %1718 = vmatprep.subr.mxu0 0.0
    %1719 = vmatpush1.msra.mxu0 0.0
    %1720 = vmatprep.subr.mxu0 0.0
    %1721 = vmatpush1.msra.mxu0 0.0
    %1722 = vmatprep.subr.mxu0 0.0
    %1723 = vmatpush1.msra.mxu0 0.0
    %1724 = vmatprep.subr.mxu0 0.0
    %1725 = vmatpush1.msra.mxu0 0.0
    %1726 = vmatprep.subr.mxu0 0.0
    %1727 = vmatpush1.msra.mxu0 0.0
    %1728 = vmatprep.subr.mxu0 0.0
    %1729 = vmatpush1.msra.mxu0 0.0
    %1730 = vmatprep.subr.mxu0 0.0
    %1731 = vmatpush1.msra.mxu0 0.0
    %1732 = vmatprep.subr.mxu0 0.0
    %1733 = vmatpush1.msra.mxu0 0.0
    %1734 = vmatprep.subr.mxu0 0.0
    %1735 = vmatpush1.msra.mxu0 0.0
    %1736 = vmatprep.subr.mxu0 0.0
    %1737 = vmatpush1.msra.mxu0 0.0
    %1738 = vmatprep.subr.mxu0 0.0
    %1739 = vmatpush1.msra.mxu0 0.0
    %1740 = vmatprep.subr.mxu0 0.0
    %1741 = vmatpush1.msra.mxu0 0.0
    %1742 = vmatprep.subr.mxu0 0.0
    %1743 = vmatpush1.msra.mxu0 0.0
    %1744 = vmatprep.subr.mxu0 0.0
    %1745 = vmatpush1.msra.mxu0 0.0
    %1746 = vmatprep.subr.mxu0 0.0
    %1747 = vmatpush1.msra.mxu0 0.0
    %1748 = vmatprep.subr.mxu0 0.0
    %1749 = vmatpush1.msra.mxu0 0.0
    %1750 = vmatprep.subr.mxu0 0.0
    %1751 = vmatpush1.msra.mxu0 0.0
    %1752 = vmatprep.subr.mxu0 0.0
    %1753 = vmatpush1.msra.mxu0 0.0
    %1754 = vmatprep.subr.mxu0 0.0
    %1755 = vmatpush1.msra.mxu0 0.0
    %1756 = vmatprep.subr.mxu0 0.0
    %1757 = vmatpush1.msra.mxu0 0.0
    %1758 = vmatprep.subr.mxu0 0.0
    %1759 = vmatpush1.msra.mxu0 0.0
    %1760 = vmatprep.mubr.f32.mxu0 0.0
    %1761 = vmatmul.mubr.f32.gmra.mrb[0].mxu0 %v1694
    %v1762 = vpop.f32.mrb[0].mxu0
    %v1763 = vadd.f32 %v371, %v1762
    %v1764 = vpop.f32.mrb[0].mxu0
    %1765 = vdwg.mxu0
    %v1766 = vadd.f32 %v1763, %v1690
    %v1767 = vmax.f32 %v1766, 0.0
    %1768 = vmatprep.subr.mxu0 0.0
    %1769 = vmatpush1.msra.mxu0 %v208
    %1770 = vmatprep.subr.mxu0 0.0
    %1771 = vmatpush1.msra.mxu0 %v209
    %1772 = vmatprep.subr.mxu0 0.0
    %1773 = vmatpush1.msra.mxu0 %v210
    %1774 = vmatprep.subr.mxu0 0.0
    %1775 = vmatpush1.msra.mxu0 %v211
    %1776 = vmatprep.subr.mxu0 0.0
    %1777 = vmatpush1.msra.mxu0 0.0
    %1778 = vmatprep.subr.mxu0 0.0
    %1779 = vmatpush1.msra.mxu0 0.0
    %1780 = vmatprep.subr.mxu0 0.0
    %1781 = vmatpush1.msra.mxu0 0.0
    %1782 = vmatprep.subr.mxu0 0.0
    %1783 = vmatpush1.msra.mxu0 0.0
    %1784 = vmatprep.subr.mxu0 0.0
    %1785 = vmatpush1.msra.mxu0 0.0
    %1786 = vmatprep.subr.mxu0 0.0
    %1787 = vmatpush1.msra.mxu0 0.0
    %1788 = vmatprep.subr.mxu0 0.0
    %1789 = vmatpush1.msra.mxu0 0.0
    %1790 = vmatprep.subr.mxu0 0.0
    %1791 = vmatpush1.msra.mxu0 0.0
    %1792 = vmatprep.subr.mxu0 0.0
    %1793 = vmatpush1.msra.mxu0 0.0
    %1794 = vmatprep.subr.mxu0 0.0
    %1795 = vmatpush1.msra.mxu0 0.0
    %1796 = vmatprep.subr.mxu0 0.0
    %1797 = vmatpush1.msra.mxu0 0.0
    %1798 = vmatprep.subr.mxu0 0.0
    %1799 = vmatpush1.msra.mxu0 0.0
    %1800 = vmatprep.subr.mxu0 0.0
    %1801 = vmatpush1.msra.mxu0 0.0
    %1802 = vmatprep.subr.mxu0 0.0
    %1803 = vmatpush1.msra.mxu0 0.0
    %1804 = vmatprep.subr.mxu0 0.0
    %1805 = vmatpush1.msra.mxu0 0.0
    %1806 = vmatprep.subr.mxu0 0.0
    %1807 = vmatpush1.msra.mxu0 0.0
    %1808 = vmatprep.subr.mxu0 0.0
    %1809 = vmatpush1.msra.mxu0 0.0
    %1810 = vmatprep.subr.mxu0 0.0
    %1811 = vmatpush1.msra.mxu0 0.0
    %1812 = vmatprep.subr.mxu0 0.0
    %1813 = vmatpush1.msra.mxu0 0.0
    %1814 = vmatprep.subr.mxu0 0.0
    %1815 = vmatpush1.msra.mxu0 0.0
    %1816 = vmatprep.subr.mxu0 0.0
    %1817 = vmatpush1.msra.mxu0 0.0
    %1818 = vmatprep.subr.mxu0 0.0
    %1819 = vmatpush1.msra.mxu0 0.0
    %1820 = vmatprep.subr.mxu0 0.0
    %1821 = vmatpush1.msra.mxu0 0.0
    %1822 = vmatprep.subr.mxu0 0.0
    %1823 = vmatpush1.msra.mxu0 0.0
    %1824 = vmatprep.subr.mxu0 0.0
    %1825 = vmatpush1.msra.mxu0 0.0
    %1826 = vmatprep.subr.mxu0 0.0
    %1827 = vmatpush1.msra.mxu0 0.0
    %1828 = vmatprep.subr.mxu0 0.0
    %1829 = vmatpush1.msra.mxu0 0.0
    %1830 = vmatprep.subr.mxu0 0.0
    %1831 = vmatpush1.msra.mxu0 0.0
    %1832 = vmatprep.mubr.f32.mxu0 0.0
    %1833 = vmatmul.mubr.f32.gmra.mrb[0].mxu0 %v1694
    %v1834 = vpop.f32.mrb[0].mxu0
    %v1835 = vadd.f32 0.0, %v1834
    %v1836 = vpop.f32.mrb[0].mxu0
    %1837 = vdwg.mxu0
    %v1838 = vadd.f32 %v205, %v1835
    %v1839 = vmax.f32 %v1838, 0.0
    %v1841 = vsel %vm221, %v1767, 0
    %1843 = vmatprep.subr.mxu0 0.0
    %1844 = vmatpush1.msra.mxu0 %v212
    %1845 = vmatprep.subr.mxu0 0.0
    %1846 = vmatpush1.msra.mxu0 %v213
    %1847 = vmatprep.subr.mxu0 0.0
    %1848 = vmatpush1.msra.mxu0 %v214
    %1849 = vmatprep.subr.mxu0 0.0
    %1850 = vmatpush1.msra.mxu0 %v215
    %1851 = vmatprep.subr.mxu0 0.0
    %1852 = vmatpush1.msra.mxu0 0.0
    %1853 = vmatprep.subr.mxu0 0.0
    %1854 = vmatpush1.msra.mxu0 0.0
    %1855 = vmatprep.subr.mxu0 0.0
    %1856 = vmatpush1.msra.mxu0 0.0
    %1857 = vmatprep.subr.mxu0 0.0
    %1858 = vmatpush1.msra.mxu0 0.0
    %1859 = vmatprep.subr.mxu0 0.0
    %1860 = vmatpush1.msra.mxu0 0.0
    %1861 = vmatprep.subr.mxu0 0.0
    %1862 = vmatpush1.msra.mxu0 0.0
    %1863 = vmatprep.subr.mxu0 0.0
    %1864 = vmatpush1.msra.mxu0 0.0
    %1865 = vmatprep.subr.mxu0 0.0
    %1866 = vmatpush1.msra.mxu0 0.0
    %1867 = vmatprep.subr.mxu0 0.0
    %1868 = vmatpush1.msra.mxu0 0.0
    %1869 = vmatprep.subr.mxu0 0.0
    %1870 = vmatpush1.msra.mxu0 0.0
    %1871 = vmatprep.subr.mxu0 0.0
    %1872 = vmatpush1.msra.mxu0 0.0
    %1873 = vmatprep.subr.mxu0 0.0
    %1874 = vmatpush1.msra.mxu0 0.0
    %1875 = vmatprep.subr.mxu0 0.0
    %1876 = vmatpush1.msra.mxu0 0.0
    %1877 = vmatprep.subr.mxu0 0.0
    %1878 = vmatpush1.msra.mxu0 0.0
    %1879 = vmatprep.subr.mxu0 0.0
    %1880 = vmatpush1.msra.mxu0 0.0
    %1881 = vmatprep.subr.mxu0 0.0
    %1882 = vmatpush1.msra.mxu0 0.0
    %1883 = vmatprep.subr.mxu0 0.0
    %1884 = vmatpush1.msra.mxu0 0.0
    %1885 = vmatprep.subr.mxu0 0.0
    %1886 = vmatpush1.msra.mxu0 0.0
    %1887 = vmatprep.subr.mxu0 0.0
    %1888 = vmatpush1.msra.mxu0 0.0
    %1889 = vmatprep.subr.mxu0 0.0
    %1890 = vmatpush1.msra.mxu0 0.0
    %1891 = vmatprep.subr.mxu0 0.0
    %1892 = vmatpush1.msra.mxu0 0.0
    %1893 = vmatprep.subr.mxu0 0.0
    %1894 = vmatpush1.msra.mxu0 0.0
    %1895 = vmatprep.subr.mxu0 0.0
    %1896 = vmatpush1.msra.mxu0 0.0
    %1897 = vmatprep.subr.mxu0 0.0
    %1898 = vmatpush1.msra.mxu0 0.0
    %1899 = vmatprep.subr.mxu0 0.0
    %1900 = vmatpush1.msra.mxu0 0.0
    %1901 = vmatprep.subr.mxu0 0.0
    %1902 = vmatpush1.msra.mxu0 0.0
    %1903 = vmatprep.subr.mxu0 0.0
    %1904 = vmatpush1.msra.mxu0 0.0
    %1905 = vmatprep.subr.mxu0 0.0
    %1906 = vmatpush1.msra.mxu0 0.0
    %1907 = vmatprep.mubr.f32.mxu0 0.0
    %1908 = vmatmul.mubr.f32.gmra.mrb[0].mxu0 %v1841
    %v1909 = vpop.f32.mrb[0].mxu0
    %v1910 = vadd.f32 0.0, %v1909
    %v1911 = vpop.f32.mrb[0].mxu0
    %1912 = vdwg.mxu0
    %v1914 = vsel %vm221, %v1839, 0
    %1916 = vmatprep.subr.mxu0 0.0
    %1917 = vmatpush1.msra.mxu0 %v216
    %1918 = vmatprep.subr.mxu0 0.0
    %1919 = vmatpush1.msra.mxu0 %v217
    %1920 = vmatprep.subr.mxu0 0.0
    %1921 = vmatpush1.msra.mxu0 %v218
    %1922 = vmatprep.subr.mxu0 0.0
    %1923 = vmatpush1.msra.mxu0 %v219
    %1924 = vmatprep.subr.mxu0 0.0
    %1925 = vmatpush1.msra.mxu0 0.0
    %1926 = vmatprep.subr.mxu0 0.0
    %1927 = vmatpush1.msra.mxu0 0.0
    %1928 = vmatprep.subr.mxu0 0.0
    %1929 = vmatpush1.msra.mxu0 0.0
    %1930 = vmatprep.subr.mxu0 0.0
    %1931 = vmatpush1.msra.mxu0 0.0
    %1932 = vmatprep.subr.mxu0 0.0
    %1933 = vmatpush1.msra.mxu0 0.0
    %1934 = vmatprep.subr.mxu0 0.0
    %1935 = vmatpush1.msra.mxu0 0.0
    %1936 = vmatprep.subr.mxu0 0.0
    %1937 = vmatpush1.msra.mxu0 0.0
    %1938 = vmatprep.subr.mxu0 0.0
    %1939 = vmatpush1.msra.mxu0 0.0
    %1940 = vmatprep.subr.mxu0 0.0
    %1941 = vmatpush1.msra.mxu0 0.0
    %1942 = vmatprep.subr.mxu0 0.0
    %1943 = vmatpush1.msra.mxu0 0.0
    %1944 = vmatprep.subr.mxu0 0.0
    %1945 = vmatpush1.msra.mxu0 0.0
    %1946 = vmatprep.subr.mxu0 0.0
    %1947 = vmatpush1.msra.mxu0 0.0
    %1948 = vmatprep.subr.mxu0 0.0
    %1949 = vmatpush1.msra.mxu0 0.0
    %1950 = vmatprep.subr.mxu0 0.0
    %1951 = vmatpush1.msra.mxu0 0.0
    %1952 = vmatprep.subr.mxu0 0.0
    %1953 = vmatpush1.msra.mxu0 0.0
    %1954 = vmatprep.subr.mxu0 0.0
    %1955 = vmatpush1.msra.mxu0 0.0
    %1956 = vmatprep.subr.mxu0 0.0
    %1957 = vmatpush1.msra.mxu0 0.0
    %1958 = vmatprep.subr.mxu0 0.0
    %1959 = vmatpush1.msra.mxu0 0.0
    %1960 = vmatprep.subr.mxu0 0.0
    %1961 = vmatpush1.msra.mxu0 0.0
    %1962 = vmatprep.subr.mxu0 0.0
    %1963 = vmatpush1.msra.mxu0 0.0
    %1964 = vmatprep.subr.mxu0 0.0
    %1965 = vmatpush1.msra.mxu0 0.0
    %1966 = vmatprep.subr.mxu0 0.0
    %1967 = vmatpush1.msra.mxu0 0.0
    %1968 = vmatprep.subr.mxu0 0.0
    %1969 = vmatpush1.msra.mxu0 0.0
    %1970 = vmatprep.subr.mxu0 0.0
    %1971 = vmatpush1.msra.mxu0 0.0
    %1972 = vmatprep.subr.mxu0 0.0
    %1973 = vmatpush1.msra.mxu0 0.0
    %1974 = vmatprep.subr.mxu0 0.0
    %1975 = vmatpush1.msra.mxu0 0.0
    %1976 = vmatprep.subr.mxu0 0.0
    %1977 = vmatpush1.msra.mxu0 0.0
    %1978 = vmatprep.subr.mxu0 0.0
    %1979 = vmatpush1.msra.mxu0 0.0
    %1980 = vmatprep.mubr.f32.mxu0 0.0
    %1981 = vmatmul.mubr.f32.gmra.mrb[0].mxu0 %v1914
    %v1982 = vpop.f32.mrb[0].mxu0
    %v1983 = vadd.f32 %v371, %v1982
    %v1984 = vpop.f32.mrb[0].mxu0
    %1985 = vdwg.mxu0
    %v1986 = vadd.f32 %v1983, %v1910
    %v1987 = vmax.f32 %v1986, 0.0
    %v1988 = vld [vmem:[#allocation5] sm:$0xff]
    %v1989 = vld [vmem:[#allocation5 + $0x8] sm:$0xff]
    %v1990 = vld [vmem:[#allocation5 + $0x10] sm:$0xff]
    %v1991 = vld [vmem:[#allocation5 + $0x18] sm:$0xff]
    %v1992 = vld [vmem:[%s8] sm:$0x1]
    %v1994 = vlaneseq
    %v1995 = vshrl.u32 %v1994, 7
    %v1996 = vsub.s32 0, %v1995
    %v1997 = vrot.slane %v1992, %v1996
    %v2000 = vsel %vm221, %v1987, 0
    %2002 = vmatprep.subr.mxu0 0.0
    %2003 = vmatpush1.msra.mxu0 %v1988
    %2004 = vmatprep.subr.mxu0 0.0
    %2005 = vmatpush1.msra.mxu0 %v1989
    %2006 = vmatprep.subr.mxu0 0.0
    %2007 = vmatpush1.msra.mxu0 %v1990
    %2008 = vmatprep.subr.mxu0 0.0
    %2009 = vmatpush1.msra.mxu0 %v1991
    %2010 = vmatprep.subr.mxu0 0.0
    %2011 = vmatpush1.msra.mxu0 0.0
    %2012 = vmatprep.subr.mxu0 0.0
    %2013 = vmatpush1.msra.mxu0 0.0
    %2014 = vmatprep.subr.mxu0 0.0
    %2015 = vmatpush1.msra.mxu0 0.0
    %2016 = vmatprep.subr.mxu0 0.0
    %2017 = vmatpush1.msra.mxu0 0.0
    %2018 = vmatprep.subr.mxu0 0.0
    %2019 = vmatpush1.msra.mxu0 0.0
    %2020 = vmatprep.subr.mxu0 0.0
    %2021 = vmatpush1.msra.mxu0 0.0
    %2022 = vmatprep.subr.mxu0 0.0
    %2023 = vmatpush1.msra.mxu0 0.0
    %2024 = vmatprep.subr.mxu0 0.0
    %2025 = vmatpush1.msra.mxu0 0.0
    %2026 = vmatprep.subr.mxu0 0.0
    %2027 = vmatpush1.msra.mxu0 0.0
    %2028 = vmatprep.subr.mxu0 0.0
    %2029 = vmatpush1.msra.mxu0 0.0
    %2030 = vmatprep.subr.mxu0 0.0
    %2031 = vmatpush1.msra.mxu0 0.0
    %2032 = vmatprep.subr.mxu0 0.0
    %2033 = vmatpush1.msra.mxu0 0.0
    %2034 = vmatprep.subr.mxu0 0.0
    %2035 = vmatpush1.msra.mxu0 0.0
    %2036 = vmatprep.subr.mxu0 0.0
    %2037 = vmatpush1.msra.mxu0 0.0
    %2038 = vmatprep.subr.mxu0 0.0
    %2039 = vmatpush1.msra.mxu0 0.0
    %2040 = vmatprep.subr.mxu0 0.0
    %2041 = vmatpush1.msra.mxu0 0.0
    %2042 = vmatprep.subr.mxu0 0.0
    %2043 = vmatpush1.msra.mxu0 0.0
    %2044 = vmatprep.subr.mxu0 0.0
    %2045 = vmatpush1.msra.mxu0 0.0
    %2046 = vmatprep.subr.mxu0 0.0
    %2047 = vmatpush1.msra.mxu0 0.0
    %2048 = vmatprep.subr.mxu0 0.0
    %2049 = vmatpush1.msra.mxu0 0.0
    %2050 = vmatprep.subr.mxu0 0.0
    %2051 = vmatpush1.msra.mxu0 0.0
    %2052 = vmatprep.subr.mxu0 0.0
    %2053 = vmatpush1.msra.mxu0 0.0
    %2054 = vmatprep.subr.mxu0 0.0
    %2055 = vmatpush1.msra.mxu0 0.0
    %2056 = vmatprep.subr.mxu0 0.0
    %2057 = vmatpush1.msra.mxu0 0.0
    %2058 = vmatprep.subr.mxu0 0.0
    %2059 = vmatpush1.msra.mxu0 0.0
    %2060 = vmatprep.subr.mxu0 0.0
    %2061 = vmatpush1.msra.mxu0 0.0
    %2062 = vmatprep.subr.mxu0 0.0
    %2063 = vmatpush1.msra.mxu0 0.0
    %2064 = vmatprep.subr.mxu0 0.0
    %2065 = vmatpush1.msra.mxu0 0.0
    %2066 = vmatprep.mubr.f32.mxu0 0.0
    %2067 = vmatmul.mubr.f32.gmra.mrb[0].mxu0 %v2000
    %v2068 = vpop.f32.mrb[0].mxu0
    %v2069 = vadd.f32 %v1997, %v2068
    %v2070 = vpop.f32.mrb[0].mxu0
    %2071 = vdwg.mxu0
    %2072 = vst [vmem:[#allocation7] sm:$0xff] %v2069
    // Predicated region
    $region46: #{tpu_custom_call.1} parent=1 // pred_check
      _
    $region47: #{tpu_custom_call.1} parent=1 // pred_check_branch
      %2074 = sbr.rel (0) target = $region49
    $region48: #{tpu_custom_call.1} parent=1 // pred_region
      %s2076 = ssub.s32 128, 128
      %2077 = vsyncadd [#allocation4], %s2076
      %s2079 = sshll.u32 [#allocation7], 4
      %s2080 = int_to_ptr.vmem [resolvable:$true] %s2079
      %2082 = dma.vmem_to_hbm [thread:$0]  %s2080, 128, %s9, [#allocation4]
    $region49: #{tpu_custom_call.1} parent=1 // pred_fallthru
      _
    // Predicated region
    $region50: #{tpu_custom_call.1} parent=1 // pred_check
      _
    $region51: #{tpu_custom_call.1} parent=1 // pred_check_branch
      %2084 = sbr.rel (0) target = $region53
    $region52: #{tpu_custom_call.1} parent=1 // pred_region
      %2085 = dma.done [#allocation4], 128
    $region53: #{tpu_custom_call.1} parent=1 // pred_fallthru
      _
    %2086 = vsyncpa [#allocation3], 1
    %2087 = vsyncpa [#allocation6], 1
    %2088 = vsyncpa [#allocation4], 1

</llo_original>
